<compile_context>
chip_gen: v7x
topology: tpu7x:2x2x1
jax: 0.10.0
libtpu: 0.0.40
codegen_flags: <defaults>
</compile_context>

<pallas_src>
import functools

import jax
import jax.numpy as jnp
from jax.experimental import pallas as pl
from jax.experimental.pallas import tpu as pltpu


# ----------------------------------------------------------------------------
# Fused attention kernel: one grid step = one batch element
# ----------------------------------------------------------------------------
def _attn_kernel(x_ref, wqkv_ref, bqkv_ref, wout_ref, bout_ref, o_ref,
                 *, scale, heads, dh):
    C = heads * dh

    x = x_ref[...]                                           # (C, N) bf16

    # --- fused QKV projection, lane-dense over the spatial axis (K = C) ----
    qkv = jnp.dot(wqkv_ref[...], x,
                  preferred_element_type=jnp.float32) + bqkv_ref[...]  # (3C, N) f32

    head_outs = []
    for h in range(heads):                                   # statically unrolled
        q = qkv[h * dh:(h + 1) * dh, :]                      # (dh, N) f32
        k = qkv[C + h * dh:C + (h + 1) * dh, :]
        v = qkv[2 * C + h * dh:2 * C + (h + 1) * dh, :]

        # F.normalize(., dim=-1) == L2-normalize over the spatial axis (lanes).
        # The attention scale is folded into q (N*dh multiply, not N^2).
        q_ss = jnp.sum(q * q, axis=-1, keepdims=True)        # (dh, 1)
        k_ss = jnp.sum(k * k, axis=-1, keepdims=True)
        qn = (q * (scale * jax.lax.rsqrt(jnp.maximum(q_ss, 1e-24)))).astype(jnp.bfloat16)
        kn = (k * jax.lax.rsqrt(jnp.maximum(k_ss, 1e-24))).astype(jnp.bfloat16)

        # simT[j, i] = scale * sum_d k_hat[d, j] * q_hat[d, i]
        # (keys in sublanes, queries in lanes -> softmax stats are (1, N) rows
        #  that broadcast straight into the (dh, N) PV result.)
        simT = jax.lax.dot_general(
            kn, qn, dimension_numbers=(((0,), (0,)), ((), ())),
            preferred_element_type=jnp.float32)               # (N, N) f32

        m = jnp.max(simT, axis=0, keepdims=True)              # (1, N) f32
        p = jnp.exp(simT - m)                                 # f32 (v5e-safe)
        denom = jnp.sum(p, axis=0, keepdims=True)             # (1, N) f32

        # Deferred softmax normalization: PV with unnormalized weights, then
        # rescale the small (dh, N) result by the f32 row-sum reciprocal.
        o_h = jnp.dot(v.astype(jnp.bfloat16), p.astype(jnp.bfloat16),
                      preferred_element_type=jnp.float32)      # (dh, N) f32
        head_outs.append(o_h * pl.reciprocal(denom, approx=True))

    # (C, N) channel-major multi-head output, rows ordered as (h, d_head).
    o_all = jnp.concatenate(head_outs, axis=0).astype(jnp.bfloat16)

    # --- fused output projection across all heads (K = C), lane-dense store --
    o_ref[...] = (jnp.dot(wout_ref[...], o_all,
                          preferred_element_type=jnp.float32) + bout_ref[...])


# ----------------------------------------------------------------------------
# Wrapper: layout plumbing only (reshape / bf16 casts; no transposes)
# ----------------------------------------------------------------------------
def attention_forward(x, wqkv, bqkv, wout, bout, *, heads, scale):
    """x: (B, C, H, W, Z) like the PyTorch module. Returns (B, C, H, W, Z) f32."""
    B, C, H, W, Z = x.shape
    assert C % heads == 0, "dim must be divisible by heads"
    dh = C // heads
    N = H * W * Z

    # Keep the native channel-major layout (C, N); just flatten + cast.
    x_cn = x.reshape(B, C, N).astype(jnp.bfloat16)

    # Conv3d 1x1 weights are plain (out, in) matrices.
    w_qkv = wqkv.astype(jnp.bfloat16)                     # (3C, C)
    b_qkv = bqkv.reshape(3 * C, 1).astype(jnp.float32)    # (3C, 1)
    w_out = wout.astype(jnp.bfloat16)                     # (C, C)
    b_out = bout.reshape(C, 1).astype(jnp.float32)        # (C, 1)

    kernel = functools.partial(_attn_kernel, scale=float(scale), heads=heads, dh=dh)

    out = pl.pallas_call(
        kernel,
        out_shape=jax.ShapeDtypeStruct((B, C, N), jnp.float32),
        grid=(B,),
        in_specs=[
            pl.BlockSpec((None, C, N), lambda b: (b, 0, 0)),     # x       (C, N)
            pl.BlockSpec((3 * C, C), lambda b: (0, 0)),          # Wqkv    (loaded once)
            pl.BlockSpec((3 * C, 1), lambda b: (0, 0)),          # bqkv
            pl.BlockSpec((C, C), lambda b: (0, 0)),              # Wout
            pl.BlockSpec((C, 1), lambda b: (0, 0)),              # bout
        ],
        out_specs=pl.BlockSpec((None, C, N), lambda b: (b, 0, 0)),  # (C, N) lane-dense
        compiler_params=pltpu.CompilerParams(
            dimension_semantics=("parallel",),        # batch across TCs (v7x megacore)
            vmem_limit_bytes=32 * 1024 * 1024),       # safe everywhere; raise for big N
    )(x_cn, w_qkv, b_qkv, w_out, b_out)

    return out.reshape(B, C, H, W, Z)


# ----------------------------------------------------------------------------
# Pure-JAX f32 reference (mirrors the PyTorch forward exactly)
# ----------------------------------------------------------------------------
def attention_reference(x, wqkv, bqkv, wout, bout, *, heads, scale):
    B, C, H, W, Z = x.shape
    N = H * W * Z
    dh = C // heads
    xf = x.reshape(B, C, N)
    qkv = jnp.einsum('oc,bcn->bon', wqkv, xf) + bqkv[None, :, None]      # (B, 3C, N)
    q, k, v = jnp.split(qkv, 3, axis=1)
    q, k, v = (t.reshape(B, heads, dh, N) for t in (q, k, v))

    def l2n(t):
        n = jnp.sqrt(jnp.sum(t * t, axis=-1, keepdims=True))
        return t / jnp.maximum(n, 1e-12)

    q, k = l2n(q), l2n(k)
    sim = jnp.einsum('bhdi,bhdj->bhij', q, k) * scale
    attn = jax.nn.softmax(sim, axis=-1)
    out = jnp.einsum('bhij,bhdj->bhid', attn, v)                         # (B, h, N, dh)
    out = jnp.transpose(out, (0, 1, 3, 2)).reshape(B, C, N)              # b (h d) n
    res = jnp.einsum('oc,bcn->bon', wout, out) + bout[None, :, None]
    return res.reshape(B, C, H, W, Z)


if __name__ == "__main__":
    key = jax.random.PRNGKey(0)
    B, dim, heads, scale = 2, 32, 4, 10.0
    H, W, Z = 4, 4, 8                       # N = H*W*Z = 128 -> lane-dense tiles

    k0, k1, k2, k3, k4 = jax.random.split(key, 5)
    x = jax.random.normal(k0, (B, dim, H, W, Z), jnp.float32)
    wqkv = jax.random.normal(k1, (3 * dim, dim), jnp.float32) / jnp.sqrt(dim)
    bqkv = 0.1 * jax.random.normal(k2, (3 * dim,), jnp.float32)
    wout = jax.random.normal(k3, (dim, dim), jnp.float32) / jnp.sqrt(dim)
    bout = 0.1 * jax.random.normal(k4, (dim,), jnp.float32)

    out = attention_forward(x, wqkv, bqkv, wout, bout, heads=heads, scale=scale)
    out = jax.block_until_ready(out)
    assert out.shape == (B, dim, H, W, Z), out.shape

    ref = attention_reference(x, wqkv, bqkv, wout, bout, heads=heads, scale=scale)
    if bool(jnp.allclose(out, ref, atol=3e-2, rtol=3e-2)):
        print("KERNEL_OK")
    else:
        print("MISMATCH", float(jnp.max(jnp.abs(out - ref))))
</pallas_src>

<mosaic_0001>
module attributes {stable_mosaic.version = 11 : i64} {
  func.func @_attn_kernel(%arg0: i32, %arg1: memref<1x32x128xbf16, #tpu.memory_space<vmem>>, %arg2: memref<96x32xbf16, #tpu.memory_space<vmem>>, %arg3: memref<96x1xf32, #tpu.memory_space<vmem>>, %arg4: memref<32x32xbf16, #tpu.memory_space<vmem>>, %arg5: memref<32x1xf32, #tpu.memory_space<vmem>>, %arg6: memref<1x32x128xf32, #tpu.memory_space<vmem>>) attributes {dimension_semantics = [#tpu.dimension_semantics<parallel>], iteration_bounds = array<i64: 2>, scalar_prefetch = 0 : i64, scratch_operands = 0 : i64, tpu.core_type = #tpu.core_type<tc>, window_params = [{transform_indices = @transform_0, window_bounds = array<i64: 1, 32, 128>}, {pipeline_mode = #tpu.pipeline_mode<synchronous>, transform_indices = @transform_1, window_bounds = array<i64: 96, 32>}, {pipeline_mode = #tpu.pipeline_mode<synchronous>, transform_indices = @transform_2, window_bounds = array<i64: 96, 1>}, {pipeline_mode = #tpu.pipeline_mode<synchronous>, transform_indices = @transform_3, window_bounds = array<i64: 32, 32>}, {pipeline_mode = #tpu.pipeline_mode<synchronous>, transform_indices = @transform_4, window_bounds = array<i64: 32, 1>}, {transform_indices = @transform_5, window_bounds = array<i64: 1, 32, 128>}]} {
    %c0 = arith.constant 0 : index
    %c0_0 = arith.constant 0 : index
    %c0_1 = arith.constant 0 : index
    %0 = vector.load %arg1[%c0, %c0_0, %c0_1] : memref<1x32x128xbf16, #tpu.memory_space<vmem>>, vector<1x32x128xbf16>
    %1 = vector.shape_cast %0 : vector<1x32x128xbf16> to vector<32x128xbf16>
    %c0_2 = arith.constant 0 : index
    %c0_3 = arith.constant 0 : index
    %2 = vector.load %arg2[%c0_2, %c0_3] : memref<96x32xbf16, #tpu.memory_space<vmem>>, vector<96x32xbf16>
    %cst = arith.constant dense<0.000000e+00> : vector<96x128xf32>
    %3 = tpu.matmul %2, %1, %cst {dimension_numbers = #tpu.dot_dimension_numbers<[1], [0], [0], [1], [0, 0, 1, 1], [], []>} : vector<96x32xbf16>, vector<32x128xbf16>, vector<96x128xf32> -> vector<96x128xf32>
    %c0_4 = arith.constant 0 : index
    %c0_5 = arith.constant 0 : index
    %4 = vector.load %arg3[%c0_4, %c0_5] : memref<96x1xf32, #tpu.memory_space<vmem>>, vector<96x1xf32>
    %5 = vector.broadcast %4 : vector<96x1xf32> to vector<96x128xf32>
    %6 = arith.addf %3, %5 : vector<96x128xf32>
    %7 = vector.extract_strided_slice %6 {offsets = [0, 0], sizes = [8, 128], strides = [1, 1]} : vector<96x128xf32> to vector<8x128xf32>
    %8 = vector.extract_strided_slice %6 {offsets = [32, 0], sizes = [8, 128], strides = [1, 1]} : vector<96x128xf32> to vector<8x128xf32>
    %9 = vector.extract_strided_slice %6 {offsets = [64, 0], sizes = [8, 128], strides = [1, 1]} : vector<96x128xf32> to vector<8x128xf32>
    %10 = arith.mulf %7, %7 : vector<8x128xf32>
    %cst_6 = arith.constant dense<0.000000e+00> : vector<8xf32>
    %11 = vector.multi_reduction <add>, %10, %cst_6 [1] : vector<8x128xf32> to vector<8xf32>
    %12 = vector.shape_cast %11 : vector<8xf32> to vector<8x1xf32>
    %13 = arith.mulf %8, %8 : vector<8x128xf32>
    %cst_7 = arith.constant dense<0.000000e+00> : vector<8xf32>
    %14 = vector.multi_reduction <add>, %13, %cst_7 [1] : vector<8x128xf32> to vector<8xf32>
    %15 = vector.shape_cast %14 : vector<8xf32> to vector<8x1xf32>
    %cst_8 = arith.constant 1.000000e-24 : f32
    %16 = vector.broadcast %cst_8 : f32 to vector<8x1xf32>
    %17 = arith.maximumf %12, %16 : vector<8x1xf32>
    %18 = math.rsqrt %17 : vector<8x1xf32>
    %cst_9 = arith.constant 1.000000e+01 : f32
    %19 = vector.broadcast %cst_9 : f32 to vector<8x1xf32>
    %20 = arith.mulf %19, %18 : vector<8x1xf32>
    %21 = vector.broadcast %20 : vector<8x1xf32> to vector<8x128xf32>
    %22 = arith.mulf %7, %21 : vector<8x128xf32>
    %23 = arith.truncf %22 : vector<8x128xf32> to vector<8x128xbf16>
    %cst_10 = arith.constant 1.000000e-24 : f32
    %24 = vector.broadcast %cst_10 : f32 to vector<8x1xf32>
    %25 = arith.maximumf %15, %24 : vector<8x1xf32>
    %26 = math.rsqrt %25 : vector<8x1xf32>
    %27 = vector.broadcast %26 : vector<8x1xf32> to vector<8x128xf32>
    %28 = arith.mulf %8, %27 : vector<8x128xf32>
    %29 = arith.truncf %28 : vector<8x128xf32> to vector<8x128xbf16>
    %cst_11 = arith.constant dense<0.000000e+00> : vector<128x128xf32>
    %30 = tpu.matmul %29, %23, %cst_11 {dimension_numbers = #tpu.dot_dimension_numbers<[0], [0], [1], [1], [0, 1, 1, 1], [], []>} : vector<8x128xbf16>, vector<8x128xbf16>, vector<128x128xf32> -> vector<128x128xf32>
    %cst_12 = arith.constant dense<0xFF800000> : vector<128xf32>
    %31 = vector.multi_reduction <maximumf>, %30, %cst_12 [0] : vector<128x128xf32> to vector<128xf32>
    %32 = vector.shape_cast %31 : vector<128xf32> to vector<1x128xf32>
    %33 = vector.broadcast %32 : vector<1x128xf32> to vector<128x128xf32>
    %34 = arith.subf %30, %33 : vector<128x128xf32>
    %35 = math.exp %34 : vector<128x128xf32>
    %cst_13 = arith.constant dense<0.000000e+00> : vector<128xf32>
    %36 = vector.multi_reduction <add>, %35, %cst_13 [0] : vector<128x128xf32> to vector<128xf32>
    %37 = vector.shape_cast %36 : vector<128xf32> to vector<1x128xf32>
    %38 = arith.truncf %9 : vector<8x128xf32> to vector<8x128xbf16>
    %39 = arith.truncf %35 : vector<128x128xf32> to vector<128x128xbf16>
    %cst_14 = arith.constant dense<0.000000e+00> : vector<8x128xf32>
    %40 = tpu.matmul %38, %39, %cst_14 {dimension_numbers = #tpu.dot_dimension_numbers<[1], [0], [0], [1], [0, 0, 1, 1], [], []>} : vector<8x128xbf16>, vector<128x128xbf16>, vector<8x128xf32> -> vector<8x128xf32>
    %41 = tpu.reciprocal %37 {approx = true} : vector<1x128xf32> -> vector<1x128xf32>
    %42 = vector.broadcast %41 : vector<1x128xf32> to vector<8x128xf32>
    %43 = arith.mulf %40, %42 : vector<8x128xf32>
    %44 = vector.extract_strided_slice %6 {offsets = [8, 0], sizes = [8, 128], strides = [1, 1]} : vector<96x128xf32> to vector<8x128xf32>
    %45 = vector.extract_strided_slice %6 {offsets = [40, 0], sizes = [8, 128], strides = [1, 1]} : vector<96x128xf32> to vector<8x128xf32>
    %46 = vector.extract_strided_slice %6 {offsets = [72, 0], sizes = [8, 128], strides = [1, 1]} : vector<96x128xf32> to vector<8x128xf32>
    %47 = arith.mulf %44, %44 : vector<8x128xf32>
    %cst_15 = arith.constant dense<0.000000e+00> : vector<8xf32>
    %48 = vector.multi_reduction <add>, %47, %cst_15 [1] : vector<8x128xf32> to vector<8xf32>
    %49 = vector.shape_cast %48 : vector<8xf32> to vector<8x1xf32>
    %50 = arith.mulf %45, %45 : vector<8x128xf32>
    %cst_16 = arith.constant dense<0.000000e+00> : vector<8xf32>
    %51 = vector.multi_reduction <add>, %50, %cst_16 [1] : vector<8x128xf32> to vector<8xf32>
    %52 = vector.shape_cast %51 : vector<8xf32> to vector<8x1xf32>
    %cst_17 = arith.constant 1.000000e-24 : f32
    %53 = vector.broadcast %cst_17 : f32 to vector<8x1xf32>
    %54 = arith.maximumf %49, %53 : vector<8x1xf32>
    %55 = math.rsqrt %54 : vector<8x1xf32>
    %cst_18 = arith.constant 1.000000e+01 : f32
    %56 = vector.broadcast %cst_18 : f32 to vector<8x1xf32>
    %57 = arith.mulf %56, %55 : vector<8x1xf32>
    %58 = vector.broadcast %57 : vector<8x1xf32> to vector<8x128xf32>
    %59 = arith.mulf %44, %58 : vector<8x128xf32>
    %60 = arith.truncf %59 : vector<8x128xf32> to vector<8x128xbf16>
    %cst_19 = arith.constant 1.000000e-24 : f32
    %61 = vector.broadcast %cst_19 : f32 to vector<8x1xf32>
    %62 = arith.maximumf %52, %61 : vector<8x1xf32>
    %63 = math.rsqrt %62 : vector<8x1xf32>
    %64 = vector.broadcast %63 : vector<8x1xf32> to vector<8x128xf32>
    %65 = arith.mulf %45, %64 : vector<8x128xf32>
    %66 = arith.truncf %65 : vector<8x128xf32> to vector<8x128xbf16>
    %cst_20 = arith.constant dense<0.000000e+00> : vector<128x128xf32>
    %67 = tpu.matmul %66, %60, %cst_20 {dimension_numbers = #tpu.dot_dimension_numbers<[0], [0], [1], [1], [0, 1, 1, 1], [], []>} : vector<8x128xbf16>, vector<8x128xbf16>, vector<128x128xf32> -> vector<128x128xf32>
    %cst_21 = arith.constant dense<0xFF800000> : vector<128xf32>
    %68 = vector.multi_reduction <maximumf>, %67, %cst_21 [0] : vector<128x128xf32> to vector<128xf32>
    %69 = vector.shape_cast %68 : vector<128xf32> to vector<1x128xf32>
    %70 = vector.broadcast %69 : vector<1x128xf32> to vector<128x128xf32>
    %71 = arith.subf %67, %70 : vector<128x128xf32>
    %72 = math.exp %71 : vector<128x128xf32>
    %cst_22 = arith.constant dense<0.000000e+00> : vector<128xf32>
    %73 = vector.multi_reduction <add>, %72, %cst_22 [0] : vector<128x128xf32> to vector<128xf32>
    %74 = vector.shape_cast %73 : vector<128xf32> to vector<1x128xf32>
    %75 = arith.truncf %46 : vector<8x128xf32> to vector<8x128xbf16>
    %76 = arith.truncf %72 : vector<128x128xf32> to vector<128x128xbf16>
    %cst_23 = arith.constant dense<0.000000e+00> : vector<8x128xf32>
    %77 = tpu.matmul %75, %76, %cst_23 {dimension_numbers = #tpu.dot_dimension_numbers<[1], [0], [0], [1], [0, 0, 1, 1], [], []>} : vector<8x128xbf16>, vector<128x128xbf16>, vector<8x128xf32> -> vector<8x128xf32>
    %78 = tpu.reciprocal %74 {approx = true} : vector<1x128xf32> -> vector<1x128xf32>
    %79 = vector.broadcast %78 : vector<1x128xf32> to vector<8x128xf32>
    %80 = arith.mulf %77, %79 : vector<8x128xf32>
    %81 = vector.extract_strided_slice %6 {offsets = [16, 0], sizes = [8, 128], strides = [1, 1]} : vector<96x128xf32> to vector<8x128xf32>
    %82 = vector.extract_strided_slice %6 {offsets = [48, 0], sizes = [8, 128], strides = [1, 1]} : vector<96x128xf32> to vector<8x128xf32>
    %83 = vector.extract_strided_slice %6 {offsets = [80, 0], sizes = [8, 128], strides = [1, 1]} : vector<96x128xf32> to vector<8x128xf32>
    %84 = arith.mulf %81, %81 : vector<8x128xf32>
    %cst_24 = arith.constant dense<0.000000e+00> : vector<8xf32>
    %85 = vector.multi_reduction <add>, %84, %cst_24 [1] : vector<8x128xf32> to vector<8xf32>
    %86 = vector.shape_cast %85 : vector<8xf32> to vector<8x1xf32>
    %87 = arith.mulf %82, %82 : vector<8x128xf32>
    %cst_25 = arith.constant dense<0.000000e+00> : vector<8xf32>
    %88 = vector.multi_reduction <add>, %87, %cst_25 [1] : vector<8x128xf32> to vector<8xf32>
    %89 = vector.shape_cast %88 : vector<8xf32> to vector<8x1xf32>
    %cst_26 = arith.constant 1.000000e-24 : f32
    %90 = vector.broadcast %cst_26 : f32 to vector<8x1xf32>
    %91 = arith.maximumf %86, %90 : vector<8x1xf32>
    %92 = math.rsqrt %91 : vector<8x1xf32>
    %cst_27 = arith.constant 1.000000e+01 : f32
    %93 = vector.broadcast %cst_27 : f32 to vector<8x1xf32>
    %94 = arith.mulf %93, %92 : vector<8x1xf32>
    %95 = vector.broadcast %94 : vector<8x1xf32> to vector<8x128xf32>
    %96 = arith.mulf %81, %95 : vector<8x128xf32>
    %97 = arith.truncf %96 : vector<8x128xf32> to vector<8x128xbf16>
    %cst_28 = arith.constant 1.000000e-24 : f32
    %98 = vector.broadcast %cst_28 : f32 to vector<8x1xf32>
    %99 = arith.maximumf %89, %98 : vector<8x1xf32>
    %100 = math.rsqrt %99 : vector<8x1xf32>
    %101 = vector.broadcast %100 : vector<8x1xf32> to vector<8x128xf32>
    %102 = arith.mulf %82, %101 : vector<8x128xf32>
    %103 = arith.truncf %102 : vector<8x128xf32> to vector<8x128xbf16>
    %cst_29 = arith.constant dense<0.000000e+00> : vector<128x128xf32>
    %104 = tpu.matmul %103, %97, %cst_29 {dimension_numbers = #tpu.dot_dimension_numbers<[0], [0], [1], [1], [0, 1, 1, 1], [], []>} : vector<8x128xbf16>, vector<8x128xbf16>, vector<128x128xf32> -> vector<128x128xf32>
    %cst_30 = arith.constant dense<0xFF800000> : vector<128xf32>
    %105 = vector.multi_reduction <maximumf>, %104, %cst_30 [0] : vector<128x128xf32> to vector<128xf32>
    %106 = vector.shape_cast %105 : vector<128xf32> to vector<1x128xf32>
    %107 = vector.broadcast %106 : vector<1x128xf32> to vector<128x128xf32>
    %108 = arith.subf %104, %107 : vector<128x128xf32>
    %109 = math.exp %108 : vector<128x128xf32>
    %cst_31 = arith.constant dense<0.000000e+00> : vector<128xf32>
    %110 = vector.multi_reduction <add>, %109, %cst_31 [0] : vector<128x128xf32> to vector<128xf32>
    %111 = vector.shape_cast %110 : vector<128xf32> to vector<1x128xf32>
    %112 = arith.truncf %83 : vector<8x128xf32> to vector<8x128xbf16>
    %113 = arith.truncf %109 : vector<128x128xf32> to vector<128x128xbf16>
    %cst_32 = arith.constant dense<0.000000e+00> : vector<8x128xf32>
    %114 = tpu.matmul %112, %113, %cst_32 {dimension_numbers = #tpu.dot_dimension_numbers<[1], [0], [0], [1], [0, 0, 1, 1], [], []>} : vector<8x128xbf16>, vector<128x128xbf16>, vector<8x128xf32> -> vector<8x128xf32>
    %115 = tpu.reciprocal %111 {approx = true} : vector<1x128xf32> -> vector<1x128xf32>
    %116 = vector.broadcast %115 : vector<1x128xf32> to vector<8x128xf32>
    %117 = arith.mulf %114, %116 : vector<8x128xf32>
    %118 = vector.extract_strided_slice %6 {offsets = [24, 0], sizes = [8, 128], strides = [1, 1]} : vector<96x128xf32> to vector<8x128xf32>
    %119 = vector.extract_strided_slice %6 {offsets = [56, 0], sizes = [8, 128], strides = [1, 1]} : vector<96x128xf32> to vector<8x128xf32>
    %120 = vector.extract_strided_slice %6 {offsets = [88, 0], sizes = [8, 128], strides = [1, 1]} : vector<96x128xf32> to vector<8x128xf32>
    %121 = arith.mulf %118, %118 : vector<8x128xf32>
    %cst_33 = arith.constant dense<0.000000e+00> : vector<8xf32>
    %122 = vector.multi_reduction <add>, %121, %cst_33 [1] : vector<8x128xf32> to vector<8xf32>
    %123 = vector.shape_cast %122 : vector<8xf32> to vector<8x1xf32>
    %124 = arith.mulf %119, %119 : vector<8x128xf32>
    %cst_34 = arith.constant dense<0.000000e+00> : vector<8xf32>
    %125 = vector.multi_reduction <add>, %124, %cst_34 [1] : vector<8x128xf32> to vector<8xf32>
    %126 = vector.shape_cast %125 : vector<8xf32> to vector<8x1xf32>
    %cst_35 = arith.constant 1.000000e-24 : f32
    %127 = vector.broadcast %cst_35 : f32 to vector<8x1xf32>
    %128 = arith.maximumf %123, %127 : vector<8x1xf32>
    %129 = math.rsqrt %128 : vector<8x1xf32>
    %cst_36 = arith.constant 1.000000e+01 : f32
    %130 = vector.broadcast %cst_36 : f32 to vector<8x1xf32>
    %131 = arith.mulf %130, %129 : vector<8x1xf32>
    %132 = vector.broadcast %131 : vector<8x1xf32> to vector<8x128xf32>
    %133 = arith.mulf %118, %132 : vector<8x128xf32>
    %134 = arith.truncf %133 : vector<8x128xf32> to vector<8x128xbf16>
    %cst_37 = arith.constant 1.000000e-24 : f32
    %135 = vector.broadcast %cst_37 : f32 to vector<8x1xf32>
    %136 = arith.maximumf %126, %135 : vector<8x1xf32>
    %137 = math.rsqrt %136 : vector<8x1xf32>
    %138 = vector.broadcast %137 : vector<8x1xf32> to vector<8x128xf32>
    %139 = arith.mulf %119, %138 : vector<8x128xf32>
    %140 = arith.truncf %139 : vector<8x128xf32> to vector<8x128xbf16>
    %cst_38 = arith.constant dense<0.000000e+00> : vector<128x128xf32>
    %141 = tpu.matmul %140, %134, %cst_38 {dimension_numbers = #tpu.dot_dimension_numbers<[0], [0], [1], [1], [0, 1, 1, 1], [], []>} : vector<8x128xbf16>, vector<8x128xbf16>, vector<128x128xf32> -> vector<128x128xf32>
    %cst_39 = arith.constant dense<0xFF800000> : vector<128xf32>
    %142 = vector.multi_reduction <maximumf>, %141, %cst_39 [0] : vector<128x128xf32> to vector<128xf32>
    %143 = vector.shape_cast %142 : vector<128xf32> to vector<1x128xf32>
    %144 = vector.broadcast %143 : vector<1x128xf32> to vector<128x128xf32>
    %145 = arith.subf %141, %144 : vector<128x128xf32>
    %146 = math.exp %145 : vector<128x128xf32>
    %cst_40 = arith.constant dense<0.000000e+00> : vector<128xf32>
    %147 = vector.multi_reduction <add>, %146, %cst_40 [0] : vector<128x128xf32> to vector<128xf32>
    %148 = vector.shape_cast %147 : vector<128xf32> to vector<1x128xf32>
    %149 = arith.truncf %120 : vector<8x128xf32> to vector<8x128xbf16>
    %150 = arith.truncf %146 : vector<128x128xf32> to vector<128x128xbf16>
    %cst_41 = arith.constant dense<0.000000e+00> : vector<8x128xf32>
    %151 = tpu.matmul %149, %150, %cst_41 {dimension_numbers = #tpu.dot_dimension_numbers<[1], [0], [0], [1], [0, 0, 1, 1], [], []>} : vector<8x128xbf16>, vector<128x128xbf16>, vector<8x128xf32> -> vector<8x128xf32>
    %152 = tpu.reciprocal %148 {approx = true} : vector<1x128xf32> -> vector<1x128xf32>
    %153 = vector.broadcast %152 : vector<1x128xf32> to vector<8x128xf32>
    %154 = arith.mulf %151, %153 : vector<8x128xf32>
    %155 = tpu.concatenate %43, %80, %117, %154 in 0 : vector<8x128xf32>, vector<8x128xf32>, vector<8x128xf32>, vector<8x128xf32> -> vector<32x128xf32>
    %156 = arith.truncf %155 : vector<32x128xf32> to vector<32x128xbf16>
    %c0_42 = arith.constant 0 : index
    %c0_43 = arith.constant 0 : index
    %157 = vector.load %arg4[%c0_42, %c0_43] : memref<32x32xbf16, #tpu.memory_space<vmem>>, vector<32x32xbf16>
    %cst_44 = arith.constant dense<0.000000e+00> : vector<32x128xf32>
    %158 = tpu.matmul %157, %156, %cst_44 {dimension_numbers = #tpu.dot_dimension_numbers<[1], [0], [0], [1], [0, 0, 1, 1], [], []>} : vector<32x32xbf16>, vector<32x128xbf16>, vector<32x128xf32> -> vector<32x128xf32>
    %c0_45 = arith.constant 0 : index
    %c0_46 = arith.constant 0 : index
    %159 = vector.load %arg5[%c0_45, %c0_46] : memref<32x1xf32, #tpu.memory_space<vmem>>, vector<32x1xf32>
    %160 = vector.broadcast %159 : vector<32x1xf32> to vector<32x128xf32>
    %161 = arith.addf %158, %160 : vector<32x128xf32>
    %c0_47 = arith.constant 0 : index
    %c0_48 = arith.constant 0 : index
    %c0_49 = arith.constant 0 : index
    %162 = vector.load %arg6[%c0_47, %c0_48, %c0_49] : memref<1x32x128xf32, #tpu.memory_space<vmem>>, vector<1x32x128xf32>
    %163 = vector.shape_cast %162 : vector<1x32x128xf32> to vector<32x128xf32>
    %164 = vector.shape_cast %161 : vector<32x128xf32> to vector<1x32x128xf32>
    tpu.vector_store %arg6[%c0_47, %c0_48, %c0_49], %164 {strides = array<i32>} : memref<1x32x128xf32, #tpu.memory_space<vmem>>, vector<1x32x128xf32>,
    return
  }
  func.func @transform_0(%arg0: i32) -> (i32, i32, i32) {
    %c0_i32 = arith.constant 0 : i32
    %c0_i32_0 = arith.constant 0 : i32
    %c0_i32_1 = arith.constant 0 : i32
    return %arg0, %c0_i32, %c0_i32_0 : i32, i32, i32
  }
  func.func @transform_1(%arg0: i32) -> (i32, i32) {
    %c0_i32 = arith.constant 0 : i32
    %c0_i32_0 = arith.constant 0 : i32
    %c0_i32_1 = arith.constant 0 : i32
    return %c0_i32, %c0_i32_0 : i32, i32
  }
  func.func @transform_2(%arg0: i32) -> (i32, i32) {
    %c0_i32 = arith.constant 0 : i32
    %c0_i32_0 = arith.constant 0 : i32
    %c0_i32_1 = arith.constant 0 : i32
    return %c0_i32, %c0_i32_0 : i32, i32
  }
  func.func @transform_3(%arg0: i32) -> (i32, i32) {
    %c0_i32 = arith.constant 0 : i32
    %c0_i32_0 = arith.constant 0 : i32
    %c0_i32_1 = arith.constant 0 : i32
    return %c0_i32, %c0_i32_0 : i32, i32
  }
  func.func @transform_4(%arg0: i32) -> (i32, i32) {
    %c0_i32 = arith.constant 0 : i32
    %c0_i32_0 = arith.constant 0 : i32
    %c0_i32_1 = arith.constant 0 : i32
    return %c0_i32, %c0_i32_0 : i32, i32
  }
  func.func @transform_5(%arg0: i32) -> (i32, i32, i32) {
    %c0_i32 = arith.constant 0 : i32
    %c0_i32_0 = arith.constant 0 : i32
    %c0_i32_1 = arith.constant 0 : i32
    return %arg0, %c0_i32, %c0_i32_0 : i32, i32, i32
  }
}

</mosaic_0001>

<llo_original>
// kernel: tpu_custom_call.1
$region0: #{tpu_custom_call.1}
  #allocation0 [shape = 'u32[]', space=smem, size = 0x4, offset = 0x4, fixed_abs, tag = 'smem constant byte address 0x4 - core index']
  #allocation1 [shape = 'u32[144,128]{1,0:T(1,128)}', space=vmem, size = 0x12000, scoped, tag = 'internal scratch']
  %s0 = inlined_call_operand.vmem [shape: bf16[2,32,128], index: 0, kind: input, shape index: {}]
  %s1 = inlined_call_operand.vmem [shape: bf16[96,32], index: 1, kind: input, shape index: {}]
  %s2 = inlined_call_operand.vmem [shape: f32[96,1], index: 2, kind: input, shape index: {}]
  %s3 = inlined_call_operand.vmem [shape: bf16[32,32], index: 3, kind: input, shape index: {}]
  %s4 = inlined_call_operand.vmem [shape: f32[32,1], index: 4, kind: input, shape index: {}]
  %s5 = inlined_call_operand.hbm [shape: f32[2,32,128], index: 5, kind: output, shape index: {}]
  %s6 = sld [smem:[#allocation0]]
  $region53: #{tpu_custom_call.1} parent=0
    _
  %s8 = ssub.s32 1, %s6
  %s9 = scalar_select 0, %s8, %s6
  $region1: #{tpu_custom_call.1} parent=0
    #allocation2 [shape = 'u8[32768]{0}', space=vmem, size = 0x8000, scoped, tag = 'output window, operand 0']
    #allocation3 [shape = 's32[2]{0}', space=sflag, size = 0x8, scoped, tag = 'scoped memory for tpu_custom_call.1']
    %10 = vsyncpa [#allocation3], 0
    %s11 = scalar_lea.sflag [#allocation3], 1
    %12 = vsyncpa %s11, 0
    loop: start=0, step=1, limit=4
    $region2: #{tpu_custom_call.1} parent=1 // loop_pre_header
      _
    $region3: #{tpu_custom_call.1} parent=1 // loop_header
      %s14 = sphi 0, %s18
      %p15 = scmp.ge.s32.totalorder %s14, 4
      %s24 = sphi 0, %s26
      %s27 = sphi 0, %s24
      %s28 = sphi 0, %s27
      %s44 = sphi 0, %s28
      %s48 = sphi 0, %s48
      %s50 = sphi 0, %s48
      %s51 = sphi 0, %s50
      %s65 = sphi 0, %s51
      %s69 = sphi 0, %s69
      %s71 = sphi 0, %s69
      %s72 = sphi 0, %s71
      %s86 = sphi 0, %s72
      %s90 = sphi 0, %s90
      %s92 = sphi 0, %s90
      %s93 = sphi 0, %s92
      %s107 = sphi 0, %s93
      %s111 = sphi 0, %s111
      %s113 = sphi 0, %s111
      %s114 = sphi 0, %s113
      %s128 = sphi 0, %s114
      %s134 = sphi 0, %s136
      %s137 = sphi 0, %s134
      %s138 = sphi 0, %s137
      %s154 = sphi 0, %s138
    $region4: #{tpu_custom_call.1} parent=1 // loop_header_branch
      %17 = sbr.rel (%p15) target = $region8
    $region5: #{tpu_custom_call.1} parent=1 // loop_body
      %s19 = ssub.s32 %s14, 1
      %s20 = ssub.s32 %s14, 2
      %s21 = sadd.s32 %s14, 1
      %s22 = ssub.s32 %s14, %s21
      %p23 = scmp.eq.s32.totalorder %s22, 0
      %s25 = sadd.s32 %s24, 1
      %s26 = scalar_select %p23, %s24, %s25
      %p29 = pneg %p23
      %p30 = scmp.eq.s32.totalorder %s14, 1
      %p31 = por %p29, %p30
      %p32 = scmp.ne.s32.totalorder %s24, %s27
      %p33 = scmp.eq.s32.totalorder %s14, 0
      %p34 = por %p32, %p33
      %p35 = scmp.ne.s32.totalorder %s24, %s27
      %p36 = scmp.eq.s32.totalorder %s19, 1
      %p37 = por %p35, %p36
      %p38 = scmp.ne.s32.totalorder %s27, %s28
      %p39 = scmp.eq.s32.totalorder %s19, 0
      %p40 = por %p38, %p39
      %p41 = scmp.ne.s32.totalorder %s27, %s28
      %p42 = scmp.eq.s32.totalorder %s20, 1
      %p43 = por %p41, %p42
      %p45 = scmp.ne.s32.totalorder %s28, %s44
      %p46 = scmp.eq.s32.totalorder %s20, 0
      %p47 = por %p45, %p46
      %s49 = sadd.s32 %s48, 1
      %p52 = scmp.eq.s32.totalorder %s14, 1
      %p53 = scmp.ne.s32.totalorder %s48, %s50
      %p54 = scmp.eq.s32.totalorder %s14, 0
      %p55 = por %p53, %p54
      %p56 = scmp.ne.s32.totalorder %s48, %s50
      %p57 = scmp.eq.s32.totalorder %s19, 1
      %p58 = por %p56, %p57
      %p59 = scmp.ne.s32.totalorder %s50, %s51
      %p60 = scmp.eq.s32.totalorder %s19, 0
      %p61 = por %p59, %p60
      %p62 = scmp.ne.s32.totalorder %s50, %s51
      %p63 = scmp.eq.s32.totalorder %s20, 1
      %p64 = por %p62, %p63
      %p66 = scmp.ne.s32.totalorder %s51, %s65
      %p67 = scmp.eq.s32.totalorder %s20, 0
      %p68 = por %p66, %p67
      %s70 = sadd.s32 %s69, 1
      %p73 = scmp.eq.s32.totalorder %s14, 1
      %p74 = scmp.ne.s32.totalorder %s69, %s71
      %p75 = scmp.eq.s32.totalorder %s14, 0
      %p76 = por %p74, %p75
      %p77 = scmp.ne.s32.totalorder %s69, %s71
      %p78 = scmp.eq.s32.totalorder %s19, 1
      %p79 = por %p77, %p78
      %p80 = scmp.ne.s32.totalorder %s71, %s72
      %p81 = scmp.eq.s32.totalorder %s19, 0
      %p82 = por %p80, %p81
      %p83 = scmp.ne.s32.totalorder %s71, %s72
      %p84 = scmp.eq.s32.totalorder %s20, 1
      %p85 = por %p83, %p84
      %p87 = scmp.ne.s32.totalorder %s72, %s86
      %p88 = scmp.eq.s32.totalorder %s20, 0
      %p89 = por %p87, %p88
      %s91 = sadd.s32 %s90, 1
      %p94 = scmp.eq.s32.totalorder %s14, 1
      %p95 = scmp.ne.s32.totalorder %s90, %s92
      %p96 = scmp.eq.s32.totalorder %s14, 0
      %p97 = por %p95, %p96
      %p98 = scmp.ne.s32.totalorder %s90, %s92
      %p99 = scmp.eq.s32.totalorder %s19, 1
      %p100 = por %p98, %p99
      %p101 = scmp.ne.s32.totalorder %s92, %s93
      %p102 = scmp.eq.s32.totalorder %s19, 0
      %p103 = por %p101, %p102
      %p104 = scmp.ne.s32.totalorder %s92, %s93
      %p105 = scmp.eq.s32.totalorder %s20, 1
      %p106 = por %p104, %p105
      %p108 = scmp.ne.s32.totalorder %s93, %s107
      %p109 = scmp.eq.s32.totalorder %s20, 0
      %p110 = por %p108, %p109
      %s112 = sadd.s32 %s111, 1
      %p115 = scmp.eq.s32.totalorder %s14, 1
      %p116 = scmp.ne.s32.totalorder %s111, %s113
      %p117 = scmp.eq.s32.totalorder %s14, 0
      %p118 = por %p116, %p117
      %p119 = scmp.ne.s32.totalorder %s111, %s113
      %p120 = scmp.eq.s32.totalorder %s19, 1
      %p121 = por %p119, %p120
      %p122 = scmp.ne.s32.totalorder %s113, %s114
      %p123 = scmp.eq.s32.totalorder %s19, 0
      %p124 = por %p122, %p123
      %p125 = scmp.ne.s32.totalorder %s113, %s114
      %p126 = scmp.eq.s32.totalorder %s20, 1
      %p127 = por %p125, %p126
      %p129 = scmp.ne.s32.totalorder %s114, %s128
      %p130 = scmp.eq.s32.totalorder %s20, 0
      %p131 = por %p129, %p130
      %s132 = ssub.s32 %s14, %s21
      %p133 = scmp.eq.s32.totalorder %s132, 0
      %s135 = sadd.s32 %s134, 1
      %s136 = scalar_select %p133, %s134, %s135
      %p139 = pneg %p133
      %p140 = scmp.eq.s32.totalorder %s14, 1
      %p141 = por %p139, %p140
      %p142 = scmp.ne.s32.totalorder %s134, %s137
      %p143 = scmp.eq.s32.totalorder %s14, 0
      %p144 = por %p142, %p143
      %p145 = scmp.ne.s32.totalorder %s134, %s137
      %p146 = scmp.eq.s32.totalorder %s19, 1
      %p147 = por %p145, %p146
      %p148 = scmp.ne.s32.totalorder %s137, %s138
      %p149 = scmp.eq.s32.totalorder %s19, 0
      %p150 = por %p148, %p149
      %p151 = scmp.ne.s32.totalorder %s137, %s138
      %p152 = scmp.eq.s32.totalorder %s20, 1
      %p153 = por %p151, %p152
      %p155 = scmp.ne.s32.totalorder %s138, %s154
      %p156 = scmp.eq.s32.totalorder %s20, 0
      %p157 = por %p155, %p156
      %p158 = scmp.le.s32.totalorder 1, %s14
      %p159 = scmp.lt.s32.totalorder %s14, 3
      %p160 = pnand %p158, %p159
      %p161 = pneg %p160
      // Predicated region
      $region9: #{tpu_custom_call.1} parent=5 // pred_check
        _
      $region10: #{tpu_custom_call.1} parent=5 // pred_check_branch
        %163 = sbr.rel (%p160) target = $region12
      $region11: #{tpu_custom_call.1} parent=5 // pred_region
        %s164 = ssub.s32 %s14, 1
        // Predicated region
        $region13: #{tpu_custom_call.1} parent=11 // pred_check
          %p165 = pneg %p61
        $region14: #{tpu_custom_call.1} parent=11 // pred_check_branch
          %167 = sbr.rel (%p165) target = $region16
        $region15: #{tpu_custom_call.1} parent=11 // pred_region
          _
        $region16: #{tpu_custom_call.1} parent=11 // pred_fallthru
          _
        // Predicated region
        $region17: #{tpu_custom_call.1} parent=11 // pred_check
          %p168 = pneg %p82
        $region18: #{tpu_custom_call.1} parent=11 // pred_check_branch
          %170 = sbr.rel (%p168) target = $region20
        $region19: #{tpu_custom_call.1} parent=11 // pred_region
          _
        $region20: #{tpu_custom_call.1} parent=11 // pred_fallthru
          _
        // Predicated region
        $region21: #{tpu_custom_call.1} parent=11 // pred_check
          %p171 = pneg %p103
        $region22: #{tpu_custom_call.1} parent=11 // pred_check_branch
          %173 = sbr.rel (%p171) target = $region24
        $region23: #{tpu_custom_call.1} parent=11 // pred_region
          _
        $region24: #{tpu_custom_call.1} parent=11 // pred_fallthru
          _
        // Predicated region
        $region25: #{tpu_custom_call.1} parent=11 // pred_check
          %p174 = pneg %p124
        $region26: #{tpu_custom_call.1} parent=11 // pred_check_branch
          %176 = sbr.rel (%p174) target = $region28
        $region27: #{tpu_custom_call.1} parent=11 // pred_region
          _
        $region28: #{tpu_custom_call.1} parent=11 // pred_fallthru
          _
      $region12: #{tpu_custom_call.1} parent=5 // pred_fallthru
        _
      %p177 = scmp.lt.s32.totalorder %s14, 2
      // Predicated region
      $region29: #{tpu_custom_call.1} parent=5 // pred_check
        %p178 = pneg %p177
      $region30: #{tpu_custom_call.1} parent=5 // pred_check_branch
        %180 = sbr.rel (%p178) target = $region32
      $region31: #{tpu_custom_call.1} parent=5 // pred_region
        // Predicated region
        $region33: #{tpu_custom_call.1} parent=31 // pred_check
          %p181 = pneg %p34
        $region34: #{tpu_custom_call.1} parent=31 // pred_check_branch
          %183 = sbr.rel (%p181) target = $region36
        $region35: #{tpu_custom_call.1} parent=31 // pred_region
          %p184 = scmp.lt.s32.totalorder %s14, 1
          %s185 = scalar_select %p184, %s14, 1
          %s186 = smul.addr %s185, 4
          %s187 = smul.addr %s186, 4
          %s188 = scalar_lea.vmem %s0, %s187
        $region36: #{tpu_custom_call.1} parent=31 // pred_fallthru
          _
      $region32: #{tpu_custom_call.1} parent=5 // pred_fallthru
        _
      %p189 = scmp.le.s32.totalorder 1, %s14
      %p190 = scmp.lt.s32.totalorder %s14, 3
      %p191 = pnand %p189, %p190
      %p192 = pneg %p191
      // Predicated region
      $region37: #{tpu_custom_call.1} parent=5 // pred_check
        _
      $region38: #{tpu_custom_call.1} parent=5 // pred_check_branch
        %194 = sbr.rel (%p191) target = $region40
      $region39: #{tpu_custom_call.1} parent=5 // pred_region
        %s195 = ssub.s32 %s14, 1
        %p196 = scmp.lt.s32.totalorder %s19, 1
        %s197 = scalar_select %p196, %s19, 1
        %s198 = smul.addr %s197, 4
        %s199 = smul.addr %s198, 4
        %s200 = scalar_lea.vmem %s0, %s199
        %p201 = pneg %p40
        %p202 = pneg %p37
        %p203 = pneg %p61
        %p204 = pneg %p58
        %p205 = pneg %p82
        %p206 = pneg %p79
        %p207 = pneg %p103
        %p208 = pneg %p100
        %p209 = pneg %p124
        %p210 = pneg %p121
        %p211 = pneg %p150
        %p212 = pneg %p147
        %s213 = sand.u32 %s137, 1
        %s214 = scalar_lea.sflag [#allocation3], %s213
        %s215 = sand.u32 %s137, 1
        %s216 = smul.addr %s215, 32
        %s217 = scalar_lea.vmem [#allocation2], %s216
        %p218 = scmp.lt.s32.totalorder %s19, 1
        %s219 = scalar_select %p218, %s19, 1
        %s220 = smul.addr %s219, 4
        %s221 = smul.addr %s220, 4
        %s222 = scalar_lea.vmem %s0, %s221
        %v224 = vld [vmem:[%s222] sm:$0xf]
        %v225 = vld [vmem:[%s222 + $0x4] sm:$0xf]
        %v226 = vld [vmem:[%s222 + $0x8] sm:$0xf]
        %v227 = vld [vmem:[%s222 + $0xc] sm:$0xf]
        %v228 = vld [vmem:[%s1] sm:$0xf]
        %v229 = vld [vmem:[%s1 + $0x4] sm:$0xf]
        %v230 = vld [vmem:[%s1 + $0x8] sm:$0xf]
        %v231 = vld [vmem:[%s1 + $0xc] sm:$0xf]
        %v232 = vld [vmem:[%s1 + $0x10] sm:$0xf]
        %v233 = vld [vmem:[%s1 + $0x14] sm:$0xf]
        %v234 = vld [vmem:[%s1 + $0x18] sm:$0xf]
        %v235 = vld [vmem:[%s1 + $0x1c] sm:$0xf]
        %v236 = vld [vmem:[%s1 + $0x20] sm:$0xf]
        %v237 = vld [vmem:[%s1 + $0x24] sm:$0xf]
        %v238 = vld [vmem:[%s1 + $0x28] sm:$0xf]
        %v239 = vld [vmem:[%s1 + $0x2c] sm:$0xf]
        %v240 = vld [vmem:[%s2] sm:$0xff]
        %v241 = vld [vmem:[%s2 + $0x8] sm:$0xff]
        %v242 = vld [vmem:[%s2 + $0x10] sm:$0xff]
        %v243 = vld [vmem:[%s2 + $0x18] sm:$0xff]
        %v244 = vld [vmem:[%s2 + $0x20] sm:$0xff]
        %v245 = vld [vmem:[%s2 + $0x28] sm:$0xff]
        %v246 = vld [vmem:[%s2 + $0x30] sm:$0xff]
        %v247 = vld [vmem:[%s2 + $0x38] sm:$0xff]
        %v248 = vld [vmem:[%s2 + $0x40] sm:$0xff]
        %v249 = vld [vmem:[%s2 + $0x48] sm:$0xff]
        %v250 = vld [vmem:[%s2 + $0x50] sm:$0xff]
        %v251 = vld [vmem:[%s2 + $0x58] sm:$0xff]
        %253 = vset.pattern.permute.xlu0 0
        %254 = vperm.xlu0 %253, %v240
        %v255 = vpop.permute.xlu0 %254
        %258 = vset.pattern.permute.xlu0 0
        %259 = vperm.xlu0 %258, %v241
        %v260 = vpop.permute.xlu0 %259
        %263 = vset.pattern.permute.xlu0 0
        %264 = vperm.xlu0 %263, %v242
        %v265 = vpop.permute.xlu0 %264
        %268 = vset.pattern.permute.xlu0 0
        %269 = vperm.xlu0 %268, %v243
        %v270 = vpop.permute.xlu0 %269
        %273 = vset.pattern.permute.xlu0 0
        %274 = vperm.xlu0 %273, %v244
        %v275 = vpop.permute.xlu0 %274
        %278 = vset.pattern.permute.xlu0 0
        %279 = vperm.xlu0 %278, %v245
        %v280 = vpop.permute.xlu0 %279
        %283 = vset.pattern.permute.xlu0 0
        %284 = vperm.xlu0 %283, %v246
        %v285 = vpop.permute.xlu0 %284
        %288 = vset.pattern.permute.xlu0 0
        %289 = vperm.xlu0 %288, %v247
        %v290 = vpop.permute.xlu0 %289
        %293 = vset.pattern.permute.xlu0 0
        %294 = vperm.xlu0 %293, %v248
        %v295 = vpop.permute.xlu0 %294
        %298 = vset.pattern.permute.xlu0 0
        %299 = vperm.xlu0 %298, %v249
        %v300 = vpop.permute.xlu0 %299
        %303 = vset.pattern.permute.xlu0 0
        %304 = vperm.xlu0 %303, %v250
        %v305 = vpop.permute.xlu0 %304
        %308 = vset.pattern.permute.xlu0 0
        %309 = vperm.xlu0 %308, %v251
        %v310 = vpop.permute.xlu0 %309
        %v324 = vunpack.c.l.b16 %v228
        %v325 = vunpack.c.l.b16 %v229
        %v326 = vunpack.c.l.b16 %v230
        %v327 = vunpack.c.l.b16 %v231
        %v328 = vunpack.c.l.b16 %v232
        %v329 = vunpack.c.l.b16 %v233
        %v330 = vunpack.c.l.b16 %v234
        %v331 = vunpack.c.l.b16 %v235
        %v332 = vunpack.c.l.b16 %v236
        %v333 = vunpack.c.l.b16 %v237
        %v334 = vunpack.c.l.b16 %v238
        %v335 = vunpack.c.l.b16 %v239
        %v336 = vpack.c.b16 %v325, %v324
        %v337 = vpack.c.b16 %v327, %v326
        %v338 = vpack.c.b16 %v329, %v328
        %v339 = vpack.c.b16 %v331, %v330
        %v340 = vpack.c.b16 %v333, %v332
        %v341 = vpack.c.b16 %v335, %v334
        %v346 = vunpack.c.l.b16 %v224
        %v347 = vunpack.c.l.b16 %v225
        %v348 = vunpack.c.l.b16 %v226
        %v349 = vunpack.c.l.b16 %v227
        %v350 = vpack.c.b16 %v347, %v346
        %v351 = vpack.c.b16 %v349, %v348
        %vm354 = vcmask 261120
        %v356 = vsel %vm354, %v336, 0
        %v359 = vsel %vm354, %v337, 0
        %v362 = vsel %vm354, %v338, 0
        %v365 = vsel %vm354, %v339, 0
        %v368 = vsel %vm354, %v340, 0
        %v371 = vsel %vm354, %v341, 0
        %373 = vmatprep.subr.bf16.mxu0 0
        %374 = vmatpush1.bf16.msra.mxu0 %v350
        %375 = vmatprep.subr.bf16.mxu0 0
        %376 = vmatpush1.bf16.msra.mxu0 %v351
        %377 = vmatprep.subr.bf16.mxu0 0
        %378 = vmatpush1.bf16.msra.mxu0 0
        %379 = vmatprep.subr.bf16.mxu0 0
        %380 = vmatpush1.bf16.msra.mxu0 0
        %381 = vmatprep.subr.bf16.mxu0 0
        %382 = vmatpush1.bf16.msra.mxu0 0
        %383 = vmatprep.subr.bf16.mxu0 0
        %384 = vmatpush1.bf16.msra.mxu0 0
        %385 = vmatprep.subr.bf16.mxu0 0
        %386 = vmatpush1.bf16.msra.mxu0 0
        %387 = vmatprep.subr.bf16.mxu0 0
        %388 = vmatpush1.bf16.msra.mxu0 0
        %389 = vmatprep.subr.bf16.mxu0 0
        %390 = vmatpush1.bf16.msra.mxu0 0
        %391 = vmatprep.subr.bf16.mxu0 0
        %392 = vmatpush1.bf16.msra.mxu0 0
        %393 = vmatprep.subr.bf16.mxu0 0
        %394 = vmatpush1.bf16.msra.mxu0 0
        %395 = vmatprep.subr.bf16.mxu0 0
        %396 = vmatpush1.bf16.msra.mxu0 0
        %397 = vmatprep.subr.bf16.mxu0 0
        %398 = vmatpush1.bf16.msra.mxu0 0
        %399 = vmatprep.subr.bf16.mxu0 0
        %400 = vmatpush1.bf16.msra.mxu0 0
        %401 = vmatprep.subr.bf16.mxu0 0
        %402 = vmatpush1.bf16.msra.mxu0 0
        %403 = vmatprep.subr.bf16.mxu0 0
        %404 = vmatpush1.bf16.msra.mxu0 0
        %405 = vmatprep.mubr.bf16.mxu0 0
        %406 = vmatmul.mubr.bf16.gmra.mrb[0].mxu0 %v356
        %v407 = vpop.f32.mrb[0].mxu0
        %v408 = vadd.f32 %v255, %v407
        %v409 = vpop.f32.mrb[0].mxu0
        %v410 = vpop.f32.mrb[0].mxu0
        %v411 = vadd.f32 %v260, %v410
        %v412 = vpop.f32.mrb[0].mxu0
        %413 = vmatprep.mubr.bf16.mxu0 0
        %414 = vmatmul.mubr.bf16.gmra.mrb[0].mxu0 %v359
        %v415 = vpop.f32.mrb[0].mxu0
        %v416 = vadd.f32 %v265, %v415
        %v417 = vpop.f32.mrb[0].mxu0
        %v418 = vpop.f32.mrb[0].mxu0
        %v419 = vadd.f32 %v270, %v418
        %v420 = vpop.f32.mrb[0].mxu0
        %421 = vmatprep.mubr.bf16.mxu0 0
        %422 = vmatmul.mubr.bf16.gmra.mrb[0].mxu0 %v362
        %v423 = vpop.f32.mrb[0].mxu0
        %v424 = vadd.f32 %v275, %v423
        %v425 = vpop.f32.mrb[0].mxu0
        %v426 = vpop.f32.mrb[0].mxu0
        %v427 = vadd.f32 %v280, %v426
        %v428 = vpop.f32.mrb[0].mxu0
        %429 = vmatprep.mubr.bf16.mxu0 0
        %430 = vmatmul.mubr.bf16.gmra.mrb[0].mxu0 %v365
        %v431 = vpop.f32.mrb[0].mxu0
        %v432 = vadd.f32 %v285, %v431
        %v433 = vpop.f32.mrb[0].mxu0
        %v434 = vpop.f32.mrb[0].mxu0
        %v435 = vadd.f32 %v290, %v434
        %v436 = vpop.f32.mrb[0].mxu0
        %437 = vmatprep.mubr.bf16.mxu0 0
        %438 = vmatmul.mubr.bf16.gmra.mrb[0].mxu0 %v368
        %v439 = vpop.f32.mrb[0].mxu0
        %v440 = vadd.f32 %v295, %v439
        %v441 = vpop.f32.mrb[0].mxu0
        %v442 = vpop.f32.mrb[0].mxu0
        %v443 = vadd.f32 %v300, %v442
        %v444 = vpop.f32.mrb[0].mxu0
        %445 = vmatprep.mubr.bf16.mxu0 0
        %446 = vmatmul.mubr.bf16.gmra.mrb[0].mxu0 %v371
        %v447 = vpop.f32.mrb[0].mxu0
        %v448 = vadd.f32 %v305, %v447
        %v449 = vpop.f32.mrb[0].mxu0
        %v450 = vpop.f32.mrb[0].mxu0
        %v451 = vadd.f32 %v310, %v450
        %v452 = vpop.f32.mrb[0].mxu0
        %453 = vdwg.mxu0
        %v454 = vmul.f32 %v408, %v408
        %455 = vadd.xlane.f32.xlu0 %v454
        %v456 = vpop.xlane.xlu0 %455
        %v457 = vmul.f32 %v424, %v424
        %458 = vadd.xlane.f32.xlu0 %v457
        %v459 = vpop.xlane.xlu0 %458
        %v460 = vmax.f32 %v456, 1e-24
        %v461 = vrsqrt.pop %v460
        %v462 = vmul.f32 %v461, 10.0
        %v463 = vmul.f32 %v408, %v462
        %v464 = vpack.c.bf16 %v463, %v463
        %v465 = vmax.f32 %v459, 1e-24
        %v466 = vrsqrt.pop %v465
        %v467 = vmul.f32 %v424, %v466
        %v468 = vpack.c.bf16 %v467, %v467
        %469 = vxpose.xlu0.c.b16.start [1/8] %v468, 128
        %470 = vxpose.xlu0.c.b16.cont [2/8] 0, 128
        %471 = vxpose.xlu0.c.b16.cont [3/8] 0, 128
        %472 = vxpose.xlu0.c.b16.cont [4/8] 0, 128
        %473 = vxpose.xlu0.c.b16.cont [5/8] 0, 128
        %474 = vxpose.xlu0.c.b16.cont [6/8] 0, 128
        %475 = vxpose.xlu0.c.b16.cont [7/8] 0, 128
        %476 = vxpose.xlu0.c.b16.end [8/8] 0, 128
        %v477 = vpop.trf.xlu0
        %v478 = vpop.trf.xlu0
        %v479 = vpop.trf.xlu0
        %v480 = vpop.trf.xlu0
        %v481 = vpop.trf.xlu0
        %v482 = vpop.trf.xlu0
        %v483 = vpop.trf.xlu0
        %v484 = vpop.trf.xlu0
        %vm485 = vcmask 64512
        %v487 = vsel %vm485, %v477, 0
        %v490 = vsel %vm485, %v478, 0
        %v493 = vsel %vm485, %v479, 0
        %v496 = vsel %vm485, %v480, 0
        %v499 = vsel %vm485, %v481, 0
        %v502 = vsel %vm485, %v482, 0
        %v505 = vsel %vm485, %v483, 0
        %v508 = vsel %vm485, %v484, 0
        %vm510 = vcmask 1043456
        %v512 = vsel %vm510, %v464, 0
        %514 = vmatprep.subr.bf16.mxu0 0
        %515 = vmatpush1.bf16.msra.mxu0 %v512
        %516 = vmatprep.subr.bf16.mxu0 0
        %517 = vmatpush1.bf16.msra.mxu0 0
        %518 = vmatprep.subr.bf16.mxu0 0
        %519 = vmatpush1.bf16.msra.mxu0 0
        %520 = vmatprep.subr.bf16.mxu0 0
        %521 = vmatpush1.bf16.msra.mxu0 0
        %522 = vmatprep.subr.bf16.mxu0 0
        %523 = vmatpush1.bf16.msra.mxu0 0
        %524 = vmatprep.subr.bf16.mxu0 0
        %525 = vmatpush1.bf16.msra.mxu0 0
        %526 = vmatprep.subr.bf16.mxu0 0
        %527 = vmatpush1.bf16.msra.mxu0 0
        %528 = vmatprep.subr.bf16.mxu0 0
        %529 = vmatpush1.bf16.msra.mxu0 0
        %530 = vmatprep.subr.bf16.mxu0 0
        %531 = vmatpush1.bf16.msra.mxu0 0
        %532 = vmatprep.subr.bf16.mxu0 0
        %533 = vmatpush1.bf16.msra.mxu0 0
        %534 = vmatprep.subr.bf16.mxu0 0
        %535 = vmatpush1.bf16.msra.mxu0 0
        %536 = vmatprep.subr.bf16.mxu0 0
        %537 = vmatpush1.bf16.msra.mxu0 0
        %538 = vmatprep.subr.bf16.mxu0 0
        %539 = vmatpush1.bf16.msra.mxu0 0
        %540 = vmatprep.subr.bf16.mxu0 0
        %541 = vmatpush1.bf16.msra.mxu0 0
        %542 = vmatprep.subr.bf16.mxu0 0
        %543 = vmatpush1.bf16.msra.mxu0 0
        %544 = vmatprep.subr.bf16.mxu0 0
        %545 = vmatpush1.bf16.msra.mxu0 0
        %546 = vmatprep.mubr.bf16.mxu0 0
        %547 = vmatmul.mubr.bf16.gmra.mrb[0].mxu0 %v487
        %v548 = vpop.f32.mrb[0].mxu0
        %v549 = vadd.f32 0.0, %v548
        %v550 = vpop.f32.mrb[0].mxu0
        %v551 = vpop.f32.mrb[0].mxu0
        %v552 = vadd.f32 0.0, %v551
        %v553 = vpop.f32.mrb[0].mxu0
        %554 = vmatprep.mubr.bf16.mxu0 0
        %555 = vmatmul.mubr.bf16.gmra.mrb[0].mxu0 %v490
        %v556 = vpop.f32.mrb[0].mxu0
        %v557 = vadd.f32 0.0, %v556
        %v558 = vpop.f32.mrb[0].mxu0
        %v559 = vpop.f32.mrb[0].mxu0
        %v560 = vadd.f32 0.0, %v559
        %v561 = vpop.f32.mrb[0].mxu0
        %562 = vmatprep.mubr.bf16.mxu0 0
        %563 = vmatmul.mubr.bf16.gmra.mrb[0].mxu0 %v493
        %v564 = vpop.f32.mrb[0].mxu0
        %v565 = vadd.f32 0.0, %v564
        %v566 = vpop.f32.mrb[0].mxu0
        %v567 = vpop.f32.mrb[0].mxu0
        %v568 = vadd.f32 0.0, %v567
        %v569 = vpop.f32.mrb[0].mxu0
        %570 = vmatprep.mubr.bf16.mxu0 0
        %571 = vmatmul.mubr.bf16.gmra.mrb[0].mxu0 %v496
        %v572 = vpop.f32.mrb[0].mxu0
        %v573 = vadd.f32 0.0, %v572
        %v574 = vpop.f32.mrb[0].mxu0
        %v575 = vpop.f32.mrb[0].mxu0
        %v576 = vadd.f32 0.0, %v575
        %v577 = vpop.f32.mrb[0].mxu0
        %578 = vmatprep.mubr.bf16.mxu0 0
        %579 = vmatmul.mubr.bf16.gmra.mrb[0].mxu0 %v499
        %v580 = vpop.f32.mrb[0].mxu0
        %v581 = vadd.f32 0.0, %v580
        %v582 = vpop.f32.mrb[0].mxu0
        %v583 = vpop.f32.mrb[0].mxu0
        %v584 = vadd.f32 0.0, %v583
        %v585 = vpop.f32.mrb[0].mxu0
        %586 = vmatprep.mubr.bf16.mxu0 0
        %587 = vmatmul.mubr.bf16.gmra.mrb[0].mxu0 %v502
        %v588 = vpop.f32.mrb[0].mxu0
        %v589 = vadd.f32 0.0, %v588
        %v590 = vpop.f32.mrb[0].mxu0
        %v591 = vpop.f32.mrb[0].mxu0
        %v592 = vadd.f32 0.0, %v591
        %v593 = vpop.f32.mrb[0].mxu0
        %594 = vmatprep.mubr.bf16.mxu0 0
        %595 = vmatmul.mubr.bf16.gmra.mrb[0].mxu0 %v505
        %v596 = vpop.f32.mrb[0].mxu0
        %v597 = vadd.f32 0.0, %v596
        %v598 = vpop.f32.mrb[0].mxu0
        %v599 = vpop.f32.mrb[0].mxu0
        %v600 = vadd.f32 0.0, %v599
        %v601 = vpop.f32.mrb[0].mxu0
        %602 = vmatprep.mubr.bf16.mxu0 0
        %603 = vmatmul.mubr.bf16.gmra.mrb[0].mxu0 %v508
        %v604 = vpop.f32.mrb[0].mxu0
        %v605 = vadd.f32 0.0, %v604
        %v606 = vpop.f32.mrb[0].mxu0
        %v607 = vpop.f32.mrb[0].mxu0
        %v608 = vadd.f32 0.0, %v607
        %v609 = vpop.f32.mrb[0].mxu0
        %610 = vdwg.mxu0
        %v611 = vmax.f32 %v549, %v565
        %v612 = vmax.f32 %v552, %v568
        %v613 = vmax.f32 %v557, %v573
        %v614 = vmax.f32 %v560, %v576
        %v615 = vmax.f32 %v611, %v581
        %v616 = vmax.f32 %v612, %v584
        %v617 = vmax.f32 %v613, %v589
        %v618 = vmax.f32 %v614, %v592
        %v619 = vmax.f32 %v615, %v597
        %v620 = vmax.f32 %v616, %v600
        %v621 = vmax.f32 %v617, %v605
        %v622 = vmax.f32 %v618, %v608
        %v623 = vmax.f32 %v619, %v620
        %v624 = vmax.f32 %v621, %v622
        %v625 = vmax.f32 %v623, %v624
        %v626 = vrot.slane %v625, 4
        %v627 = vmax.f32 %v625, %v626
        %v628 = vrot.slane %v627, 2
        %v629 = vmax.f32 %v627, %v628
        %v630 = vrot.slane %v629, 1
        %v631 = vmax.f32 %v629, %v630
        %v632 = vsub.f32 %v549, %v631
        %v633 = vsub.f32 %v552, %v631
        %v634 = vsub.f32 %v557, %v631
        %v635 = vsub.f32 %v560, %v631
        %v636 = vsub.f32 %v565, %v631
        %v637 = vsub.f32 %v568, %v631
        %v638 = vsub.f32 %v573, %v631
        %v639 = vsub.f32 %v576, %v631
        %v640 = vsub.f32 %v581, %v631
        %v641 = vsub.f32 %v584, %v631
        %v642 = vsub.f32 %v589, %v631
        %v643 = vsub.f32 %v592, %v631
        %v644 = vsub.f32 %v597, %v631
        %v645 = vsub.f32 %v600, %v631
        %v646 = vsub.f32 %v605, %v631
        %v647 = vsub.f32 %v608, %v631
        %v648 = vmul.f32 %v632, 1.442695
        %v649 = vpow.pop %v648
        %v650 = vmul.f32 %v633, 1.442695
        %v651 = vpow.pop %v650
        %v652 = vmul.f32 %v634, 1.442695
        %v653 = vpow.pop %v652
        %v654 = vmul.f32 %v635, 1.442695
        %v655 = vpow.pop %v654
        %v656 = vmul.f32 %v636, 1.442695
        %v657 = vpow.pop %v656
        %v658 = vmul.f32 %v637, 1.442695
        %v659 = vpow.pop %v658
        %v660 = vmul.f32 %v638, 1.442695
        %v661 = vpow.pop %v660
        %v662 = vmul.f32 %v639, 1.442695
        %v663 = vpow.pop %v662
        %v664 = vmul.f32 %v640, 1.442695
        %v665 = vpow.pop %v664
        %v666 = vmul.f32 %v641, 1.442695
        %v667 = vpow.pop %v666
        %v668 = vmul.f32 %v642, 1.442695
        %v669 = vpow.pop %v668
        %v670 = vmul.f32 %v643, 1.442695
        %v671 = vpow.pop %v670
        %v672 = vmul.f32 %v644, 1.442695
        %v673 = vpow.pop %v672
        %v674 = vmul.f32 %v645, 1.442695
        %v675 = vpow.pop %v674
        %v676 = vmul.f32 %v646, 1.442695
        %v677 = vpow.pop %v676
        %v678 = vmul.f32 %v647, 1.442695
        %v679 = vpow.pop %v678
        %v680 = vadd.f32 %v649, %v651
        %v681 = vadd.f32 %v680, %v653
        %v682 = vadd.f32 %v681, %v655
        %v683 = vadd.f32 %v682, %v657
        %v684 = vadd.f32 %v683, %v659
        %v685 = vadd.f32 %v684, %v661
        %v686 = vadd.f32 %v685, %v663
        %v687 = vadd.f32 %v686, %v665
        %v688 = vadd.f32 %v687, %v667
        %v689 = vadd.f32 %v688, %v669
        %v690 = vadd.f32 %v689, %v671
        %v691 = vadd.f32 %v690, %v673
        %v692 = vadd.f32 %v691, %v675
        %v693 = vadd.f32 %v692, %v677
        %v694 = vadd.f32 %v693, %v679
        %v695 = vrot.slane %v694, 4
        %v696 = vadd.f32 %v694, %v695
        %v697 = vrot.slane %v696, 2
        %v698 = vadd.f32 %v696, %v697
        %v699 = vrot.slane %v698, 1
        %v700 = vadd.f32 %v698, %v699
        %v701 = vpack.c.bf16 %v440, %v440
        %v702 = vpack.c.bf16 %v651, %v649
        %v703 = vpack.c.bf16 %v655, %v653
        %v704 = vpack.c.bf16 %v659, %v657
        %v705 = vpack.c.bf16 %v663, %v661
        %v706 = vpack.c.bf16 %v667, %v665
        %v707 = vpack.c.bf16 %v671, %v669
        %v708 = vpack.c.bf16 %v675, %v673
        %v709 = vpack.c.bf16 %v679, %v677
        %710 = vmatprep.subr.bf16.mxu0 0
        %711 = vmatpush1.bf16.msra.mxu0 %v702
        %712 = vmatprep.subr.bf16.mxu0 0
        %713 = vmatpush1.bf16.msra.mxu0 %v703
        %714 = vmatprep.subr.bf16.mxu0 0
        %715 = vmatpush1.bf16.msra.mxu0 %v704
        %716 = vmatprep.subr.bf16.mxu0 0
        %717 = vmatpush1.bf16.msra.mxu0 %v705
        %718 = vmatprep.subr.bf16.mxu0 0
        %719 = vmatpush1.bf16.msra.mxu0 %v706
        %720 = vmatprep.subr.bf16.mxu0 0
        %721 = vmatpush1.bf16.msra.mxu0 %v707
        %722 = vmatprep.subr.bf16.mxu0 0
        %723 = vmatpush1.bf16.msra.mxu0 %v708
        %724 = vmatprep.subr.bf16.mxu0 0
        %725 = vmatpush1.bf16.msra.mxu0 %v709
        %726 = vmatprep.subr.bf16.mxu0 0
        %727 = vmatpush1.bf16.msra.mxu0 0
        %728 = vmatprep.subr.bf16.mxu0 0
        %729 = vmatpush1.bf16.msra.mxu0 0
        %730 = vmatprep.subr.bf16.mxu0 0
        %731 = vmatpush1.bf16.msra.mxu0 0
        %732 = vmatprep.subr.bf16.mxu0 0
        %733 = vmatpush1.bf16.msra.mxu0 0
        %734 = vmatprep.subr.bf16.mxu0 0
        %735 = vmatpush1.bf16.msra.mxu0 0
        %736 = vmatprep.subr.bf16.mxu0 0
        %737 = vmatpush1.bf16.msra.mxu0 0
        %738 = vmatprep.subr.bf16.mxu0 0
        %739 = vmatpush1.bf16.msra.mxu0 0
        %740 = vmatprep.subr.bf16.mxu0 0
        %741 = vmatpush1.bf16.msra.mxu0 0
        %742 = vmatprep.mubr.bf16.mxu0 0
        %743 = vmatmul.mubr.bf16.gmra.mrb[0].mxu0 %v701
        %v744 = vpop.f32.mrb[0].mxu0
        %v745 = vadd.f32 0.0, %v744
        %v746 = vpop.f32.mrb[0].mxu0
        %v747 = vpop.f32.mrb[0].mxu0
        %v748 = vpop.f32.mrb[0].mxu0
        %749 = vdwg.mxu0
        %v750 = vrcp.pop %v700
        %v751 = vmul.f32 %v745, %v750
        %v752 = vmul.f32 %v411, %v411
        %753 = vadd.xlane.f32.xlu0 %v752
        %v754 = vpop.xlane.xlu0 %753
        %v755 = vmul.f32 %v427, %v427
        %756 = vadd.xlane.f32.xlu0 %v755
        %v757 = vpop.xlane.xlu0 %756
        %v758 = vmax.f32 %v754, 1e-24
        %v759 = vrsqrt.pop %v758
        %v760 = vmul.f32 %v759, 10.0
        %v761 = vmul.f32 %v411, %v760
        %v762 = vpack.c.bf16 %v761, %v761
        %v763 = vmax.f32 %v757, 1e-24
        %v764 = vrsqrt.pop %v763
        %v765 = vmul.f32 %v427, %v764
        %v766 = vpack.c.bf16 %v765, %v765
        %767 = vxpose.xlu0.c.b16.start [1/8] %v766, 128
        %768 = vxpose.xlu0.c.b16.cont [2/8] 0, 128
        %769 = vxpose.xlu0.c.b16.cont [3/8] 0, 128
        %770 = vxpose.xlu0.c.b16.cont [4/8] 0, 128
        %771 = vxpose.xlu0.c.b16.cont [5/8] 0, 128
        %772 = vxpose.xlu0.c.b16.cont [6/8] 0, 128
        %773 = vxpose.xlu0.c.b16.cont [7/8] 0, 128
        %774 = vxpose.xlu0.c.b16.end [8/8] 0, 128
        %v775 = vpop.trf.xlu0
        %v776 = vpop.trf.xlu0
        %v777 = vpop.trf.xlu0
        %v778 = vpop.trf.xlu0
        %v779 = vpop.trf.xlu0
        %v780 = vpop.trf.xlu0
        %v781 = vpop.trf.xlu0
        %v782 = vpop.trf.xlu0
        %v784 = vsel %vm485, %v775, 0
        %v787 = vsel %vm485, %v776, 0
        %v790 = vsel %vm485, %v777, 0
        %v793 = vsel %vm485, %v778, 0
        %v796 = vsel %vm485, %v779, 0
        %v799 = vsel %vm485, %v780, 0
        %v802 = vsel %vm485, %v781, 0
        %v805 = vsel %vm485, %v782, 0
        %v808 = vsel %vm510, %v762, 0
        %810 = vmatprep.subr.bf16.mxu0 0
        %811 = vmatpush1.bf16.msra.mxu0 %v808
        %812 = vmatprep.subr.bf16.mxu0 0
        %813 = vmatpush1.bf16.msra.mxu0 0
        %814 = vmatprep.subr.bf16.mxu0 0
        %815 = vmatpush1.bf16.msra.mxu0 0
        %816 = vmatprep.subr.bf16.mxu0 0
        %817 = vmatpush1.bf16.msra.mxu0 0
        %818 = vmatprep.subr.bf16.mxu0 0
        %819 = vmatpush1.bf16.msra.mxu0 0
        %820 = vmatprep.subr.bf16.mxu0 0
        %821 = vmatpush1.bf16.msra.mxu0 0
        %822 = vmatprep.subr.bf16.mxu0 0
        %823 = vmatpush1.bf16.msra.mxu0 0
        %824 = vmatprep.subr.bf16.mxu0 0
        %825 = vmatpush1.bf16.msra.mxu0 0
        %826 = vmatprep.subr.bf16.mxu0 0
        %827 = vmatpush1.bf16.msra.mxu0 0
        %828 = vmatprep.subr.bf16.mxu0 0
        %829 = vmatpush1.bf16.msra.mxu0 0
        %830 = vmatprep.subr.bf16.mxu0 0
        %831 = vmatpush1.bf16.msra.mxu0 0
        %832 = vmatprep.subr.bf16.mxu0 0
        %833 = vmatpush1.bf16.msra.mxu0 0
        %834 = vmatprep.subr.bf16.mxu0 0
        %835 = vmatpush1.bf16.msra.mxu0 0
        %836 = vmatprep.subr.bf16.mxu0 0
        %837 = vmatpush1.bf16.msra.mxu0 0
        %838 = vmatprep.subr.bf16.mxu0 0
        %839 = vmatpush1.bf16.msra.mxu0 0
        %840 = vmatprep.subr.bf16.mxu0 0
        %841 = vmatpush1.bf16.msra.mxu0 0
        %842 = vmatprep.mubr.bf16.mxu0 0
        %843 = vmatmul.mubr.bf16.gmra.mrb[0].mxu0 %v784
        %v844 = vpop.f32.mrb[0].mxu0
        %v845 = vadd.f32 0.0, %v844
        %v846 = vpop.f32.mrb[0].mxu0
        %v847 = vpop.f32.mrb[0].mxu0
        %v848 = vadd.f32 0.0, %v847
        %v849 = vpop.f32.mrb[0].mxu0
        %850 = vmatprep.mubr.bf16.mxu0 0
        %851 = vmatmul.mubr.bf16.gmra.mrb[0].mxu0 %v787
        %v852 = vpop.f32.mrb[0].mxu0
        %v853 = vadd.f32 0.0, %v852
        %v854 = vpop.f32.mrb[0].mxu0
        %v855 = vpop.f32.mrb[0].mxu0
        %v856 = vadd.f32 0.0, %v855
        %v857 = vpop.f32.mrb[0].mxu0
        %858 = vmatprep.mubr.bf16.mxu0 0
        %859 = vmatmul.mubr.bf16.gmra.mrb[0].mxu0 %v790
        %v860 = vpop.f32.mrb[0].mxu0
        %v861 = vadd.f32 0.0, %v860
        %v862 = vpop.f32.mrb[0].mxu0
        %v863 = vpop.f32.mrb[0].mxu0
        %v864 = vadd.f32 0.0, %v863
        %v865 = vpop.f32.mrb[0].mxu0
        %866 = vmatprep.mubr.bf16.mxu0 0
        %867 = vmatmul.mubr.bf16.gmra.mrb[0].mxu0 %v793
        %v868 = vpop.f32.mrb[0].mxu0
        %v869 = vadd.f32 0.0, %v868
        %v870 = vpop.f32.mrb[0].mxu0
        %v871 = vpop.f32.mrb[0].mxu0
        %v872 = vadd.f32 0.0, %v871
        %v873 = vpop.f32.mrb[0].mxu0
        %874 = vmatprep.mubr.bf16.mxu0 0
        %875 = vmatmul.mubr.bf16.gmra.mrb[0].mxu0 %v796
        %v876 = vpop.f32.mrb[0].mxu0
        %v877 = vadd.f32 0.0, %v876
        %v878 = vpop.f32.mrb[0].mxu0
        %v879 = vpop.f32.mrb[0].mxu0
        %v880 = vadd.f32 0.0, %v879
        %v881 = vpop.f32.mrb[0].mxu0
        %882 = vmatprep.mubr.bf16.mxu0 0
        %883 = vmatmul.mubr.bf16.gmra.mrb[0].mxu0 %v799
        %v884 = vpop.f32.mrb[0].mxu0
        %v885 = vadd.f32 0.0, %v884
        %v886 = vpop.f32.mrb[0].mxu0
        %v887 = vpop.f32.mrb[0].mxu0
        %v888 = vadd.f32 0.0, %v887
        %v889 = vpop.f32.mrb[0].mxu0
        %890 = vmatprep.mubr.bf16.mxu0 0
        %891 = vmatmul.mubr.bf16.gmra.mrb[0].mxu0 %v802
        %v892 = vpop.f32.mrb[0].mxu0
        %v893 = vadd.f32 0.0, %v892
        %v894 = vpop.f32.mrb[0].mxu0
        %v895 = vpop.f32.mrb[0].mxu0
        %v896 = vadd.f32 0.0, %v895
        %v897 = vpop.f32.mrb[0].mxu0
        %898 = vmatprep.mubr.bf16.mxu0 0
        %899 = vmatmul.mubr.bf16.gmra.mrb[0].mxu0 %v805
        %v900 = vpop.f32.mrb[0].mxu0
        %v901 = vadd.f32 0.0, %v900
        %v902 = vpop.f32.mrb[0].mxu0
        %v903 = vpop.f32.mrb[0].mxu0
        %v904 = vadd.f32 0.0, %v903
        %v905 = vpop.f32.mrb[0].mxu0
        %906 = vdwg.mxu0
        %v907 = vmax.f32 %v845, %v861
        %v908 = vmax.f32 %v848, %v864
        %v909 = vmax.f32 %v853, %v869
        %v910 = vmax.f32 %v856, %v872
        %v911 = vmax.f32 %v907, %v877
        %v912 = vmax.f32 %v908, %v880
        %v913 = vmax.f32 %v909, %v885
        %v914 = vmax.f32 %v910, %v888
        %v915 = vmax.f32 %v911, %v893
        %v916 = vmax.f32 %v912, %v896
        %v917 = vmax.f32 %v913, %v901
        %v918 = vmax.f32 %v914, %v904
        %v919 = vmax.f32 %v915, %v916
        %v920 = vmax.f32 %v917, %v918
        %v921 = vmax.f32 %v919, %v920
        %v922 = vrot.slane %v921, 4
        %v923 = vmax.f32 %v921, %v922
        %v924 = vrot.slane %v923, 2
        %v925 = vmax.f32 %v923, %v924
        %v926 = vrot.slane %v925, 1
        %v927 = vmax.f32 %v925, %v926
        %v928 = vsub.f32 %v845, %v927
        %v929 = vsub.f32 %v848, %v927
        %v930 = vsub.f32 %v853, %v927
        %v931 = vsub.f32 %v856, %v927
        %v932 = vsub.f32 %v861, %v927
        %v933 = vsub.f32 %v864, %v927
        %v934 = vsub.f32 %v869, %v927
        %v935 = vsub.f32 %v872, %v927
        %v936 = vsub.f32 %v877, %v927
        %v937 = vsub.f32 %v880, %v927
        %v938 = vsub.f32 %v885, %v927
        %v939 = vsub.f32 %v888, %v927
        %v940 = vsub.f32 %v893, %v927
        %v941 = vsub.f32 %v896, %v927
        %v942 = vsub.f32 %v901, %v927
        %v943 = vsub.f32 %v904, %v927
        %v944 = vmul.f32 %v928, 1.442695
        %v945 = vpow.pop %v944
        %v946 = vmul.f32 %v929, 1.442695
        %v947 = vpow.pop %v946
        %v948 = vmul.f32 %v930, 1.442695
        %v949 = vpow.pop %v948
        %v950 = vmul.f32 %v931, 1.442695
        %v951 = vpow.pop %v950
        %v952 = vmul.f32 %v932, 1.442695
        %v953 = vpow.pop %v952
        %v954 = vmul.f32 %v933, 1.442695
        %v955 = vpow.pop %v954
        %v956 = vmul.f32 %v934, 1.442695
        %v957 = vpow.pop %v956
        %v958 = vmul.f32 %v935, 1.442695
        %v959 = vpow.pop %v958
        %v960 = vmul.f32 %v936, 1.442695
        %v961 = vpow.pop %v960
        %v962 = vmul.f32 %v937, 1.442695
        %v963 = vpow.pop %v962
        %v964 = vmul.f32 %v938, 1.442695
        %v965 = vpow.pop %v964
        %v966 = vmul.f32 %v939, 1.442695
        %v967 = vpow.pop %v966
        %v968 = vmul.f32 %v940, 1.442695
        %v969 = vpow.pop %v968
        %v970 = vmul.f32 %v941, 1.442695
        %v971 = vpow.pop %v970
        %v972 = vmul.f32 %v942, 1.442695
        %v973 = vpow.pop %v972
        %v974 = vmul.f32 %v943, 1.442695
        %v975 = vpow.pop %v974
        %v976 = vadd.f32 %v945, %v947
        %v977 = vadd.f32 %v976, %v949
        %v978 = vadd.f32 %v977, %v951
        %v979 = vadd.f32 %v978, %v953
        %v980 = vadd.f32 %v979, %v955
        %v981 = vadd.f32 %v980, %v957
        %v982 = vadd.f32 %v981, %v959
        %v983 = vadd.f32 %v982, %v961
        %v984 = vadd.f32 %v983, %v963
        %v985 = vadd.f32 %v984, %v965
        %v986 = vadd.f32 %v985, %v967
        %v987 = vadd.f32 %v986, %v969
        %v988 = vadd.f32 %v987, %v971
        %v989 = vadd.f32 %v988, %v973
        %v990 = vadd.f32 %v989, %v975
        %v991 = vrot.slane %v990, 4
        %v992 = vadd.f32 %v990, %v991
        %v993 = vrot.slane %v992, 2
        %v994 = vadd.f32 %v992, %v993
        %v995 = vrot.slane %v994, 1
        %v996 = vadd.f32 %v994, %v995
        %v997 = vpack.c.bf16 %v443, %v443
        %v998 = vpack.c.bf16 %v947, %v945
        %v999 = vpack.c.bf16 %v951, %v949
        %v1000 = vpack.c.bf16 %v955, %v953
        %v1001 = vpack.c.bf16 %v959, %v957
        %v1002 = vpack.c.bf16 %v963, %v961
        %v1003 = vpack.c.bf16 %v967, %v965
        %v1004 = vpack.c.bf16 %v971, %v969
        %v1005 = vpack.c.bf16 %v975, %v973
        %1006 = vmatprep.subr.bf16.mxu0 0
        %1007 = vmatpush1.bf16.msra.mxu0 %v998
        %1008 = vmatprep.subr.bf16.mxu0 0
        %1009 = vmatpush1.bf16.msra.mxu0 %v999
        %1010 = vmatprep.subr.bf16.mxu0 0
        %1011 = vmatpush1.bf16.msra.mxu0 %v1000
        %1012 = vmatprep.subr.bf16.mxu0 0
        %1013 = vmatpush1.bf16.msra.mxu0 %v1001
        %1014 = vmatprep.subr.bf16.mxu0 0
        %1015 = vmatpush1.bf16.msra.mxu0 %v1002
        %1016 = vmatprep.subr.bf16.mxu0 0
        %1017 = vmatpush1.bf16.msra.mxu0 %v1003
        %1018 = vmatprep.subr.bf16.mxu0 0
        %1019 = vmatpush1.bf16.msra.mxu0 %v1004
        %1020 = vmatprep.subr.bf16.mxu0 0
        %1021 = vmatpush1.bf16.msra.mxu0 %v1005
        %1022 = vmatprep.subr.bf16.mxu0 0
        %1023 = vmatpush1.bf16.msra.mxu0 0
        %1024 = vmatprep.subr.bf16.mxu0 0
        %1025 = vmatpush1.bf16.msra.mxu0 0
        %1026 = vmatprep.subr.bf16.mxu0 0
        %1027 = vmatpush1.bf16.msra.mxu0 0
        %1028 = vmatprep.subr.bf16.mxu0 0
        %1029 = vmatpush1.bf16.msra.mxu0 0
        %1030 = vmatprep.subr.bf16.mxu0 0
        %1031 = vmatpush1.bf16.msra.mxu0 0
        %1032 = vmatprep.subr.bf16.mxu0 0
        %1033 = vmatpush1.bf16.msra.mxu0 0
        %1034 = vmatprep.subr.bf16.mxu0 0
        %1035 = vmatpush1.bf16.msra.mxu0 0
        %1036 = vmatprep.subr.bf16.mxu0 0
        %1037 = vmatpush1.bf16.msra.mxu0 0
        %1038 = vmatprep.mubr.bf16.mxu0 0
        %1039 = vmatmul.mubr.bf16.gmra.mrb[0].mxu0 %v997
        %v1040 = vpop.f32.mrb[0].mxu0
        %v1041 = vadd.f32 0.0, %v1040
        %v1042 = vpop.f32.mrb[0].mxu0
        %v1043 = vpop.f32.mrb[0].mxu0
        %v1044 = vpop.f32.mrb[0].mxu0
        %1045 = vdwg.mxu0
        %v1046 = vrcp.pop %v996
        %v1047 = vmul.f32 %v1041, %v1046
        %v1048 = vmul.f32 %v416, %v416
        %1049 = vadd.xlane.f32.xlu0 %v1048
        %v1050 = vpop.xlane.xlu0 %1049
        %v1051 = vmul.f32 %v432, %v432
        %1052 = vadd.xlane.f32.xlu0 %v1051
        %v1053 = vpop.xlane.xlu0 %1052
        %v1054 = vmax.f32 %v1050, 1e-24
        %v1055 = vrsqrt.pop %v1054
        %v1056 = vmul.f32 %v1055, 10.0
        %v1057 = vmul.f32 %v416, %v1056
        %v1058 = vpack.c.bf16 %v1057, %v1057
        %v1059 = vmax.f32 %v1053, 1e-24
        %v1060 = vrsqrt.pop %v1059
        %v1061 = vmul.f32 %v432, %v1060
        %v1062 = vpack.c.bf16 %v1061, %v1061
        %1063 = vxpose.xlu0.c.b16.start [1/8] %v1062, 128
        %1064 = vxpose.xlu0.c.b16.cont [2/8] 0, 128
        %1065 = vxpose.xlu0.c.b16.cont [3/8] 0, 128
        %1066 = vxpose.xlu0.c.b16.cont [4/8] 0, 128
        %1067 = vxpose.xlu0.c.b16.cont [5/8] 0, 128
        %1068 = vxpose.xlu0.c.b16.cont [6/8] 0, 128
        %1069 = vxpose.xlu0.c.b16.cont [7/8] 0, 128
        %1070 = vxpose.xlu0.c.b16.end [8/8] 0, 128
        %v1071 = vpop.trf.xlu0
        %v1072 = vpop.trf.xlu0
        %v1073 = vpop.trf.xlu0
        %v1074 = vpop.trf.xlu0
        %v1075 = vpop.trf.xlu0
        %v1076 = vpop.trf.xlu0
        %v1077 = vpop.trf.xlu0
        %v1078 = vpop.trf.xlu0
        %v1080 = vsel %vm485, %v1071, 0
        %v1083 = vsel %vm485, %v1072, 0
        %v1086 = vsel %vm485, %v1073, 0
        %v1089 = vsel %vm485, %v1074, 0
        %v1092 = vsel %vm485, %v1075, 0
        %v1095 = vsel %vm485, %v1076, 0
        %v1098 = vsel %vm485, %v1077, 0
        %v1101 = vsel %vm485, %v1078, 0
        %v1104 = vsel %vm510, %v1058, 0
        %1106 = vmatprep.subr.bf16.mxu0 0
        %1107 = vmatpush1.bf16.msra.mxu0 %v1104
        %1108 = vmatprep.subr.bf16.mxu0 0
        %1109 = vmatpush1.bf16.msra.mxu0 0
        %1110 = vmatprep.subr.bf16.mxu0 0
        %1111 = vmatpush1.bf16.msra.mxu0 0
        %1112 = vmatprep.subr.bf16.mxu0 0
        %1113 = vmatpush1.bf16.msra.mxu0 0
        %1114 = vmatprep.subr.bf16.mxu0 0
        %1115 = vmatpush1.bf16.msra.mxu0 0
        %1116 = vmatprep.subr.bf16.mxu0 0
        %1117 = vmatpush1.bf16.msra.mxu0 0
        %1118 = vmatprep.subr.bf16.mxu0 0
        %1119 = vmatpush1.bf16.msra.mxu0 0
        %1120 = vmatprep.subr.bf16.mxu0 0
        %1121 = vmatpush1.bf16.msra.mxu0 0
        %1122 = vmatprep.subr.bf16.mxu0 0
        %1123 = vmatpush1.bf16.msra.mxu0 0
        %1124 = vmatprep.subr.bf16.mxu0 0
        %1125 = vmatpush1.bf16.msra.mxu0 0
        %1126 = vmatprep.subr.bf16.mxu0 0
        %1127 = vmatpush1.bf16.msra.mxu0 0
        %1128 = vmatprep.subr.bf16.mxu0 0
        %1129 = vmatpush1.bf16.msra.mxu0 0
        %1130 = vmatprep.subr.bf16.mxu0 0
        %1131 = vmatpush1.bf16.msra.mxu0 0
        %1132 = vmatprep.subr.bf16.mxu0 0
        %1133 = vmatpush1.bf16.msra.mxu0 0
        %1134 = vmatprep.subr.bf16.mxu0 0
        %1135 = vmatpush1.bf16.msra.mxu0 0
        %1136 = vmatprep.subr.bf16.mxu0 0
        %1137 = vmatpush1.bf16.msra.mxu0 0
        %1138 = vmatprep.mubr.bf16.mxu0 0
        %1139 = vmatmul.mubr.bf16.gmra.mrb[0].mxu0 %v1080
        %v1140 = vpop.f32.mrb[0].mxu0
        %v1141 = vadd.f32 0.0, %v1140
        %v1142 = vpop.f32.mrb[0].mxu0
        %v1143 = vpop.f32.mrb[0].mxu0
        %v1144 = vadd.f32 0.0, %v1143
        %v1145 = vpop.f32.mrb[0].mxu0
        %1146 = vmatprep.mubr.bf16.mxu0 0
        %1147 = vmatmul.mubr.bf16.gmra.mrb[0].mxu0 %v1083
        %v1148 = vpop.f32.mrb[0].mxu0
        %v1149 = vadd.f32 0.0, %v1148
        %v1150 = vpop.f32.mrb[0].mxu0
        %v1151 = vpop.f32.mrb[0].mxu0
        %v1152 = vadd.f32 0.0, %v1151
        %v1153 = vpop.f32.mrb[0].mxu0
        %1154 = vmatprep.mubr.bf16.mxu0 0
        %1155 = vmatmul.mubr.bf16.gmra.mrb[0].mxu0 %v1086
        %v1156 = vpop.f32.mrb[0].mxu0
        %v1157 = vadd.f32 0.0, %v1156
        %v1158 = vpop.f32.mrb[0].mxu0
        %v1159 = vpop.f32.mrb[0].mxu0
        %v1160 = vadd.f32 0.0, %v1159
        %v1161 = vpop.f32.mrb[0].mxu0
        %1162 = vmatprep.mubr.bf16.mxu0 0
        %1163 = vmatmul.mubr.bf16.gmra.mrb[0].mxu0 %v1089
        %v1164 = vpop.f32.mrb[0].mxu0
        %v1165 = vadd.f32 0.0, %v1164
        %v1166 = vpop.f32.mrb[0].mxu0
        %v1167 = vpop.f32.mrb[0].mxu0
        %v1168 = vadd.f32 0.0, %v1167
        %v1169 = vpop.f32.mrb[0].mxu0
        %1170 = vmatprep.mubr.bf16.mxu0 0
        %1171 = vmatmul.mubr.bf16.gmra.mrb[0].mxu0 %v1092
        %v1172 = vpop.f32.mrb[0].mxu0
        %v1173 = vadd.f32 0.0, %v1172
        %v1174 = vpop.f32.mrb[0].mxu0
        %v1175 = vpop.f32.mrb[0].mxu0
        %v1176 = vadd.f32 0.0, %v1175
        %v1177 = vpop.f32.mrb[0].mxu0
        %1178 = vmatprep.mubr.bf16.mxu0 0
        %1179 = vmatmul.mubr.bf16.gmra.mrb[0].mxu0 %v1095
        %v1180 = vpop.f32.mrb[0].mxu0
        %v1181 = vadd.f32 0.0, %v1180
        %v1182 = vpop.f32.mrb[0].mxu0
        %v1183 = vpop.f32.mrb[0].mxu0
        %v1184 = vadd.f32 0.0, %v1183
        %v1185 = vpop.f32.mrb[0].mxu0
        %1186 = vmatprep.mubr.bf16.mxu0 0
        %1187 = vmatmul.mubr.bf16.gmra.mrb[0].mxu0 %v1098
        %v1188 = vpop.f32.mrb[0].mxu0
        %v1189 = vadd.f32 0.0, %v1188
        %v1190 = vpop.f32.mrb[0].mxu0
        %v1191 = vpop.f32.mrb[0].mxu0
        %v1192 = vadd.f32 0.0, %v1191
        %v1193 = vpop.f32.mrb[0].mxu0
        %1194 = vmatprep.mubr.bf16.mxu0 0
        %1195 = vmatmul.mubr.bf16.gmra.mrb[0].mxu0 %v1101
        %v1196 = vpop.f32.mrb[0].mxu0
        %v1197 = vadd.f32 0.0, %v1196
        %v1198 = vpop.f32.mrb[0].mxu0
        %v1199 = vpop.f32.mrb[0].mxu0
        %v1200 = vadd.f32 0.0, %v1199
        %v1201 = vpop.f32.mrb[0].mxu0
        %1202 = vdwg.mxu0
        %v1203 = vmax.f32 %v1141, %v1157
        %v1204 = vmax.f32 %v1144, %v1160
        %v1205 = vmax.f32 %v1149, %v1165
        %v1206 = vmax.f32 %v1152, %v1168
        %v1207 = vmax.f32 %v1203, %v1173
        %v1208 = vmax.f32 %v1204, %v1176
        %v1209 = vmax.f32 %v1205, %v1181
        %v1210 = vmax.f32 %v1206, %v1184
        %v1211 = vmax.f32 %v1207, %v1189
        %v1212 = vmax.f32 %v1208, %v1192
        %v1213 = vmax.f32 %v1209, %v1197
        %v1214 = vmax.f32 %v1210, %v1200
        %v1215 = vmax.f32 %v1211, %v1212
        %v1216 = vmax.f32 %v1213, %v1214
        %v1217 = vmax.f32 %v1215, %v1216
        %v1218 = vrot.slane %v1217, 4
        %v1219 = vmax.f32 %v1217, %v1218
        %v1220 = vrot.slane %v1219, 2
        %v1221 = vmax.f32 %v1219, %v1220
        %v1222 = vrot.slane %v1221, 1
        %v1223 = vmax.f32 %v1221, %v1222
        %v1224 = vsub.f32 %v1141, %v1223
        %v1225 = vsub.f32 %v1144, %v1223
        %v1226 = vsub.f32 %v1149, %v1223
        %v1227 = vsub.f32 %v1152, %v1223
        %v1228 = vsub.f32 %v1157, %v1223
        %v1229 = vsub.f32 %v1160, %v1223
        %v1230 = vsub.f32 %v1165, %v1223
        %v1231 = vsub.f32 %v1168, %v1223
        %v1232 = vsub.f32 %v1173, %v1223
        %v1233 = vsub.f32 %v1176, %v1223
        %v1234 = vsub.f32 %v1181, %v1223
        %v1235 = vsub.f32 %v1184, %v1223
        %v1236 = vsub.f32 %v1189, %v1223
        %v1237 = vsub.f32 %v1192, %v1223
        %v1238 = vsub.f32 %v1197, %v1223
        %v1239 = vsub.f32 %v1200, %v1223
        %v1240 = vmul.f32 %v1224, 1.442695
        %v1241 = vpow.pop %v1240
        %v1242 = vmul.f32 %v1225, 1.442695
        %v1243 = vpow.pop %v1242
        %v1244 = vmul.f32 %v1226, 1.442695
        %v1245 = vpow.pop %v1244
        %v1246 = vmul.f32 %v1227, 1.442695
        %v1247 = vpow.pop %v1246
        %v1248 = vmul.f32 %v1228, 1.442695
        %v1249 = vpow.pop %v1248
        %v1250 = vmul.f32 %v1229, 1.442695
        %v1251 = vpow.pop %v1250
        %v1252 = vmul.f32 %v1230, 1.442695
        %v1253 = vpow.pop %v1252
        %v1254 = vmul.f32 %v1231, 1.442695
        %v1255 = vpow.pop %v1254
        %v1256 = vmul.f32 %v1232, 1.442695
        %v1257 = vpow.pop %v1256
        %v1258 = vmul.f32 %v1233, 1.442695
        %v1259 = vpow.pop %v1258
        %v1260 = vmul.f32 %v1234, 1.442695
        %v1261 = vpow.pop %v1260
        %v1262 = vmul.f32 %v1235, 1.442695
        %v1263 = vpow.pop %v1262
        %v1264 = vmul.f32 %v1236, 1.442695
        %v1265 = vpow.pop %v1264
        %v1266 = vmul.f32 %v1237, 1.442695
        %v1267 = vpow.pop %v1266
        %v1268 = vmul.f32 %v1238, 1.442695
        %v1269 = vpow.pop %v1268
        %v1270 = vmul.f32 %v1239, 1.442695
        %v1271 = vpow.pop %v1270
        %v1272 = vadd.f32 %v1241, %v1243
        %v1273 = vadd.f32 %v1272, %v1245
        %v1274 = vadd.f32 %v1273, %v1247
        %v1275 = vadd.f32 %v1274, %v1249
        %v1276 = vadd.f32 %v1275, %v1251
        %v1277 = vadd.f32 %v1276, %v1253
        %v1278 = vadd.f32 %v1277, %v1255
        %v1279 = vadd.f32 %v1278, %v1257
        %v1280 = vadd.f32 %v1279, %v1259
        %v1281 = vadd.f32 %v1280, %v1261
        %v1282 = vadd.f32 %v1281, %v1263
        %v1283 = vadd.f32 %v1282, %v1265
        %v1284 = vadd.f32 %v1283, %v1267
        %v1285 = vadd.f32 %v1284, %v1269
        %v1286 = vadd.f32 %v1285, %v1271
        %v1287 = vrot.slane %v1286, 4
        %v1288 = vadd.f32 %v1286, %v1287
        %v1289 = vrot.slane %v1288, 2
        %v1290 = vadd.f32 %v1288, %v1289
        %v1291 = vrot.slane %v1290, 1
        %v1292 = vadd.f32 %v1290, %v1291
        %v1293 = vpack.c.bf16 %v448, %v448
        %v1294 = vpack.c.bf16 %v1243, %v1241
        %v1295 = vpack.c.bf16 %v1247, %v1245
        %v1296 = vpack.c.bf16 %v1251, %v1249
        %v1297 = vpack.c.bf16 %v1255, %v1253
        %v1298 = vpack.c.bf16 %v1259, %v1257
        %v1299 = vpack.c.bf16 %v1263, %v1261
        %v1300 = vpack.c.bf16 %v1267, %v1265
        %v1301 = vpack.c.bf16 %v1271, %v1269
        %1302 = vmatprep.subr.bf16.mxu0 0
        %1303 = vmatpush1.bf16.msra.mxu0 %v1294
        %1304 = vmatprep.subr.bf16.mxu0 0
        %1305 = vmatpush1.bf16.msra.mxu0 %v1295
        %1306 = vmatprep.subr.bf16.mxu0 0
        %1307 = vmatpush1.bf16.msra.mxu0 %v1296
        %1308 = vmatprep.subr.bf16.mxu0 0
        %1309 = vmatpush1.bf16.msra.mxu0 %v1297
        %1310 = vmatprep.subr.bf16.mxu0 0
        %1311 = vmatpush1.bf16.msra.mxu0 %v1298
        %1312 = vmatprep.subr.bf16.mxu0 0
        %1313 = vmatpush1.bf16.msra.mxu0 %v1299
        %1314 = vmatprep.subr.bf16.mxu0 0
        %1315 = vmatpush1.bf16.msra.mxu0 %v1300
        %1316 = vmatprep.subr.bf16.mxu0 0
        %1317 = vmatpush1.bf16.msra.mxu0 %v1301
        %1318 = vmatprep.subr.bf16.mxu0 0
        %1319 = vmatpush1.bf16.msra.mxu0 0
        %1320 = vmatprep.subr.bf16.mxu0 0
        %1321 = vmatpush1.bf16.msra.mxu0 0
        %1322 = vmatprep.subr.bf16.mxu0 0
        %1323 = vmatpush1.bf16.msra.mxu0 0
        %1324 = vmatprep.subr.bf16.mxu0 0
        %1325 = vmatpush1.bf16.msra.mxu0 0
        %1326 = vmatprep.subr.bf16.mxu0 0
        %1327 = vmatpush1.bf16.msra.mxu0 0
        %1328 = vmatprep.subr.bf16.mxu0 0
        %1329 = vmatpush1.bf16.msra.mxu0 0
        %1330 = vmatprep.subr.bf16.mxu0 0
        %1331 = vmatpush1.bf16.msra.mxu0 0
        %1332 = vmatprep.subr.bf16.mxu0 0
        %1333 = vmatpush1.bf16.msra.mxu0 0
        %1334 = vmatprep.mubr.bf16.mxu0 0
        %1335 = vmatmul.mubr.bf16.gmra.mrb[0].mxu0 %v1293
        %v1336 = vpop.f32.mrb[0].mxu0
        %v1337 = vadd.f32 0.0, %v1336
        %v1338 = vpop.f32.mrb[0].mxu0
        %v1339 = vpop.f32.mrb[0].mxu0
        %v1340 = vpop.f32.mrb[0].mxu0
        %1341 = vdwg.mxu0
        %v1342 = vrcp.pop %v1292
        %v1343 = vmul.f32 %v1337, %v1342
        %v1344 = vmul.f32 %v419, %v419
        %1345 = vadd.xlane.f32.xlu0 %v1344
        %v1346 = vpop.xlane.xlu0 %1345
        %v1347 = vmul.f32 %v435, %v435
        %1348 = vadd.xlane.f32.xlu0 %v1347
        %v1349 = vpop.xlane.xlu0 %1348
        %v1350 = vmax.f32 %v1346, 1e-24
        %v1351 = vrsqrt.pop %v1350
        %v1352 = vmul.f32 %v1351, 10.0
        %v1353 = vmul.f32 %v419, %v1352
        %v1354 = vpack.c.bf16 %v1353, %v1353
        %v1355 = vmax.f32 %v1349, 1e-24
        %v1356 = vrsqrt.pop %v1355
        %v1357 = vmul.f32 %v435, %v1356
        %v1358 = vpack.c.bf16 %v1357, %v1357
        %1359 = vxpose.xlu0.c.b16.start [1/8] %v1358, 128
        %1360 = vxpose.xlu0.c.b16.cont [2/8] 0, 128
        %1361 = vxpose.xlu0.c.b16.cont [3/8] 0, 128
        %1362 = vxpose.xlu0.c.b16.cont [4/8] 0, 128
        %1363 = vxpose.xlu0.c.b16.cont [5/8] 0, 128
        %1364 = vxpose.xlu0.c.b16.cont [6/8] 0, 128
        %1365 = vxpose.xlu0.c.b16.cont [7/8] 0, 128
        %1366 = vxpose.xlu0.c.b16.end [8/8] 0, 128
        %v1367 = vpop.trf.xlu0
        %v1368 = vpop.trf.xlu0
        %v1369 = vpop.trf.xlu0
        %v1370 = vpop.trf.xlu0
        %v1371 = vpop.trf.xlu0
        %v1372 = vpop.trf.xlu0
        %v1373 = vpop.trf.xlu0
        %v1374 = vpop.trf.xlu0
        %v1376 = vsel %vm485, %v1367, 0
        %v1379 = vsel %vm485, %v1368, 0
        %v1382 = vsel %vm485, %v1369, 0
        %v1385 = vsel %vm485, %v1370, 0
        %v1388 = vsel %vm485, %v1371, 0
        %v1391 = vsel %vm485, %v1372, 0
        %v1394 = vsel %vm485, %v1373, 0
        %v1397 = vsel %vm485, %v1374, 0
        %v1400 = vsel %vm510, %v1354, 0
        %1402 = vmatprep.subr.bf16.mxu0 0
        %1403 = vmatpush1.bf16.msra.mxu0 %v1400
        %1404 = vmatprep.subr.bf16.mxu0 0
        %1405 = vmatpush1.bf16.msra.mxu0 0
        %1406 = vmatprep.subr.bf16.mxu0 0
        %1407 = vmatpush1.bf16.msra.mxu0 0
        %1408 = vmatprep.subr.bf16.mxu0 0
        %1409 = vmatpush1.bf16.msra.mxu0 0
        %1410 = vmatprep.subr.bf16.mxu0 0
        %1411 = vmatpush1.bf16.msra.mxu0 0
        %1412 = vmatprep.subr.bf16.mxu0 0
        %1413 = vmatpush1.bf16.msra.mxu0 0
        %1414 = vmatprep.subr.bf16.mxu0 0
        %1415 = vmatpush1.bf16.msra.mxu0 0
        %1416 = vmatprep.subr.bf16.mxu0 0
        %1417 = vmatpush1.bf16.msra.mxu0 0
        %1418 = vmatprep.subr.bf16.mxu0 0
        %1419 = vmatpush1.bf16.msra.mxu0 0
        %1420 = vmatprep.subr.bf16.mxu0 0
        %1421 = vmatpush1.bf16.msra.mxu0 0
        %1422 = vmatprep.subr.bf16.mxu0 0
        %1423 = vmatpush1.bf16.msra.mxu0 0
        %1424 = vmatprep.subr.bf16.mxu0 0
        %1425 = vmatpush1.bf16.msra.mxu0 0
        %1426 = vmatprep.subr.bf16.mxu0 0
        %1427 = vmatpush1.bf16.msra.mxu0 0
        %1428 = vmatprep.subr.bf16.mxu0 0
        %1429 = vmatpush1.bf16.msra.mxu0 0
        %1430 = vmatprep.subr.bf16.mxu0 0
        %1431 = vmatpush1.bf16.msra.mxu0 0
        %1432 = vmatprep.subr.bf16.mxu0 0
        %1433 = vmatpush1.bf16.msra.mxu0 0
        %1434 = vmatprep.mubr.bf16.mxu0 0
        %1435 = vmatmul.mubr.bf16.gmra.mrb[0].mxu0 %v1376
        %v1436 = vpop.f32.mrb[0].mxu0
        %v1437 = vadd.f32 0.0, %v1436
        %v1438 = vpop.f32.mrb[0].mxu0
        %v1439 = vpop.f32.mrb[0].mxu0
        %v1440 = vadd.f32 0.0, %v1439
        %v1441 = vpop.f32.mrb[0].mxu0
        %1442 = vmatprep.mubr.bf16.mxu0 0
        %1443 = vmatmul.mubr.bf16.gmra.mrb[0].mxu0 %v1379
        %v1444 = vpop.f32.mrb[0].mxu0
        %v1445 = vadd.f32 0.0, %v1444
        %v1446 = vpop.f32.mrb[0].mxu0
        %v1447 = vpop.f32.mrb[0].mxu0
        %v1448 = vadd.f32 0.0, %v1447
        %v1449 = vpop.f32.mrb[0].mxu0
        %1450 = vmatprep.mubr.bf16.mxu0 0
        %1451 = vmatmul.mubr.bf16.gmra.mrb[0].mxu0 %v1382
        %v1452 = vpop.f32.mrb[0].mxu0
        %v1453 = vadd.f32 0.0, %v1452
        %v1454 = vpop.f32.mrb[0].mxu0
        %v1455 = vpop.f32.mrb[0].mxu0
        %v1456 = vadd.f32 0.0, %v1455
        %v1457 = vpop.f32.mrb[0].mxu0
        %1458 = vmatprep.mubr.bf16.mxu0 0
        %1459 = vmatmul.mubr.bf16.gmra.mrb[0].mxu0 %v1385
        %v1460 = vpop.f32.mrb[0].mxu0
        %v1461 = vadd.f32 0.0, %v1460
        %v1462 = vpop.f32.mrb[0].mxu0
        %v1463 = vpop.f32.mrb[0].mxu0
        %v1464 = vadd.f32 0.0, %v1463
        %v1465 = vpop.f32.mrb[0].mxu0
        %1466 = vmatprep.mubr.bf16.mxu0 0
        %1467 = vmatmul.mubr.bf16.gmra.mrb[0].mxu0 %v1388
        %v1468 = vpop.f32.mrb[0].mxu0
        %v1469 = vadd.f32 0.0, %v1468
        %v1470 = vpop.f32.mrb[0].mxu0
        %v1471 = vpop.f32.mrb[0].mxu0
        %v1472 = vadd.f32 0.0, %v1471
        %v1473 = vpop.f32.mrb[0].mxu0
        %1474 = vmatprep.mubr.bf16.mxu0 0
        %1475 = vmatmul.mubr.bf16.gmra.mrb[0].mxu0 %v1391
        %v1476 = vpop.f32.mrb[0].mxu0
        %v1477 = vadd.f32 0.0, %v1476
        %v1478 = vpop.f32.mrb[0].mxu0
        %v1479 = vpop.f32.mrb[0].mxu0
        %v1480 = vadd.f32 0.0, %v1479
        %v1481 = vpop.f32.mrb[0].mxu0
        %1482 = vmatprep.mubr.bf16.mxu0 0
        %1483 = vmatmul.mubr.bf16.gmra.mrb[0].mxu0 %v1394
        %v1484 = vpop.f32.mrb[0].mxu0
        %v1485 = vadd.f32 0.0, %v1484
        %v1486 = vpop.f32.mrb[0].mxu0
        %v1487 = vpop.f32.mrb[0].mxu0
        %v1488 = vadd.f32 0.0, %v1487
        %v1489 = vpop.f32.mrb[0].mxu0
        %1490 = vmatprep.mubr.bf16.mxu0 0
        %1491 = vmatmul.mubr.bf16.gmra.mrb[0].mxu0 %v1397
        %v1492 = vpop.f32.mrb[0].mxu0
        %v1493 = vadd.f32 0.0, %v1492
        %v1494 = vpop.f32.mrb[0].mxu0
        %v1495 = vpop.f32.mrb[0].mxu0
        %v1496 = vadd.f32 0.0, %v1495
        %v1497 = vpop.f32.mrb[0].mxu0
        %1498 = vdwg.mxu0
        %v1499 = vmax.f32 %v1437, %v1453
        %v1500 = vmax.f32 %v1440, %v1456
        %v1501 = vmax.f32 %v1445, %v1461
        %v1502 = vmax.f32 %v1448, %v1464
        %v1503 = vmax.f32 %v1499, %v1469
        %v1504 = vmax.f32 %v1500, %v1472
        %v1505 = vmax.f32 %v1501, %v1477
        %v1506 = vmax.f32 %v1502, %v1480
        %v1507 = vmax.f32 %v1503, %v1485
        %v1508 = vmax.f32 %v1504, %v1488
        %v1509 = vmax.f32 %v1505, %v1493
        %v1510 = vmax.f32 %v1506, %v1496
        %v1511 = vmax.f32 %v1507, %v1508
        %v1512 = vmax.f32 %v1509, %v1510
        %v1513 = vmax.f32 %v1511, %v1512
        %v1514 = vrot.slane %v1513, 4
        %v1515 = vmax.f32 %v1513, %v1514
        %v1516 = vrot.slane %v1515, 2
        %v1517 = vmax.f32 %v1515, %v1516
        %v1518 = vrot.slane %v1517, 1
        %v1519 = vmax.f32 %v1517, %v1518
        %v1520 = vsub.f32 %v1437, %v1519
        %v1521 = vsub.f32 %v1440, %v1519
        %v1522 = vsub.f32 %v1445, %v1519
        %v1523 = vsub.f32 %v1448, %v1519
        %v1524 = vsub.f32 %v1453, %v1519
        %v1525 = vsub.f32 %v1456, %v1519
        %v1526 = vsub.f32 %v1461, %v1519
        %v1527 = vsub.f32 %v1464, %v1519
        %v1528 = vsub.f32 %v1469, %v1519
        %v1529 = vsub.f32 %v1472, %v1519
        %v1530 = vsub.f32 %v1477, %v1519
        %v1531 = vsub.f32 %v1480, %v1519
        %v1532 = vsub.f32 %v1485, %v1519
        %v1533 = vsub.f32 %v1488, %v1519
        %v1534 = vsub.f32 %v1493, %v1519
        %v1535 = vsub.f32 %v1496, %v1519
        %v1536 = vmul.f32 %v1520, 1.442695
        %v1537 = vpow.pop %v1536
        %v1538 = vmul.f32 %v1521, 1.442695
        %v1539 = vpow.pop %v1538
        %v1540 = vmul.f32 %v1522, 1.442695
        %v1541 = vpow.pop %v1540
        %v1542 = vmul.f32 %v1523, 1.442695
        %v1543 = vpow.pop %v1542
        %v1544 = vmul.f32 %v1524, 1.442695
        %v1545 = vpow.pop %v1544
        %v1546 = vmul.f32 %v1525, 1.442695
        %v1547 = vpow.pop %v1546
        %v1548 = vmul.f32 %v1526, 1.442695
        %v1549 = vpow.pop %v1548
        %v1550 = vmul.f32 %v1527, 1.442695
        %v1551 = vpow.pop %v1550
        %v1552 = vmul.f32 %v1528, 1.442695
        %v1553 = vpow.pop %v1552
        %v1554 = vmul.f32 %v1529, 1.442695
        %v1555 = vpow.pop %v1554
        %v1556 = vmul.f32 %v1530, 1.442695
        %v1557 = vpow.pop %v1556
        %v1558 = vmul.f32 %v1531, 1.442695
        %v1559 = vpow.pop %v1558
        %v1560 = vmul.f32 %v1532, 1.442695
        %v1561 = vpow.pop %v1560
        %v1562 = vmul.f32 %v1533, 1.442695
        %v1563 = vpow.pop %v1562
        %v1564 = vmul.f32 %v1534, 1.442695
        %v1565 = vpow.pop %v1564
        %v1566 = vmul.f32 %v1535, 1.442695
        %v1567 = vpow.pop %v1566
        %v1568 = vadd.f32 %v1537, %v1539
        %v1569 = vadd.f32 %v1568, %v1541
        %v1570 = vadd.f32 %v1569, %v1543
        %v1571 = vadd.f32 %v1570, %v1545
        %v1572 = vadd.f32 %v1571, %v1547
        %v1573 = vadd.f32 %v1572, %v1549
        %v1574 = vadd.f32 %v1573, %v1551
        %v1575 = vadd.f32 %v1574, %v1553
        %v1576 = vadd.f32 %v1575, %v1555
        %v1577 = vadd.f32 %v1576, %v1557
        %v1578 = vadd.f32 %v1577, %v1559
        %v1579 = vadd.f32 %v1578, %v1561
        %v1580 = vadd.f32 %v1579, %v1563
        %v1581 = vadd.f32 %v1580, %v1565
        %v1582 = vadd.f32 %v1581, %v1567
        %v1583 = vrot.slane %v1582, 4
        %v1584 = vadd.f32 %v1582, %v1583
        %v1585 = vrot.slane %v1584, 2
        %v1586 = vadd.f32 %v1584, %v1585
        %v1587 = vrot.slane %v1586, 1
        %v1588 = vadd.f32 %v1586, %v1587
        %v1589 = vpack.c.bf16 %v451, %v451
        %v1590 = vpack.c.bf16 %v1539, %v1537
        %v1591 = vpack.c.bf16 %v1543, %v1541
        %v1592 = vpack.c.bf16 %v1547, %v1545
        %v1593 = vpack.c.bf16 %v1551, %v1549
        %v1594 = vpack.c.bf16 %v1555, %v1553
        %v1595 = vpack.c.bf16 %v1559, %v1557
        %v1596 = vpack.c.bf16 %v1563, %v1561
        %v1597 = vpack.c.bf16 %v1567, %v1565
        %1598 = vmatprep.subr.bf16.mxu0 0
        %1599 = vmatpush1.bf16.msra.mxu0 %v1590
        %1600 = vmatprep.subr.bf16.mxu0 0
        %1601 = vmatpush1.bf16.msra.mxu0 %v1591
        %1602 = vmatprep.subr.bf16.mxu0 0
        %1603 = vmatpush1.bf16.msra.mxu0 %v1592
        %1604 = vmatprep.subr.bf16.mxu0 0
        %1605 = vmatpush1.bf16.msra.mxu0 %v1593
        %1606 = vmatprep.subr.bf16.mxu0 0
        %1607 = vmatpush1.bf16.msra.mxu0 %v1594
        %1608 = vmatprep.subr.bf16.mxu0 0
        %1609 = vmatpush1.bf16.msra.mxu0 %v1595
        %1610 = vmatprep.subr.bf16.mxu0 0
        %1611 = vmatpush1.bf16.msra.mxu0 %v1596
        %1612 = vmatprep.subr.bf16.mxu0 0
        %1613 = vmatpush1.bf16.msra.mxu0 %v1597
        %1614 = vmatprep.subr.bf16.mxu0 0
        %1615 = vmatpush1.bf16.msra.mxu0 0
        %1616 = vmatprep.subr.bf16.mxu0 0
        %1617 = vmatpush1.bf16.msra.mxu0 0
        %1618 = vmatprep.subr.bf16.mxu0 0
        %1619 = vmatpush1.bf16.msra.mxu0 0
        %1620 = vmatprep.subr.bf16.mxu0 0
        %1621 = vmatpush1.bf16.msra.mxu0 0
        %1622 = vmatprep.subr.bf16.mxu0 0
        %1623 = vmatpush1.bf16.msra.mxu0 0
        %1624 = vmatprep.subr.bf16.mxu0 0
        %1625 = vmatpush1.bf16.msra.mxu0 0
        %1626 = vmatprep.subr.bf16.mxu0 0
        %1627 = vmatpush1.bf16.msra.mxu0 0
        %1628 = vmatprep.subr.bf16.mxu0 0
        %1629 = vmatpush1.bf16.msra.mxu0 0
        %1630 = vmatprep.mubr.bf16.mxu0 0
        %1631 = vmatmul.mubr.bf16.gmra.mrb[0].mxu0 %v1589
        %v1632 = vpop.f32.mrb[0].mxu0
        %v1633 = vadd.f32 0.0, %v1632
        %v1634 = vpop.f32.mrb[0].mxu0
        %v1635 = vpop.f32.mrb[0].mxu0
        %v1636 = vpop.f32.mrb[0].mxu0
        %1637 = vdwg.mxu0
        %v1638 = vrcp.pop %v1588
        %v1639 = vmul.f32 %v1633, %v1638
        %v1640 = vpack.c.bf16 %v1047, %v751
        %v1641 = vpack.c.bf16 %v1639, %v1343
        %v1642 = vld [vmem:[%s3] sm:$0xf]
        %v1643 = vld [vmem:[%s3 + $0x4] sm:$0xf]
        %v1644 = vld [vmem:[%s3 + $0x8] sm:$0xf]
        %v1645 = vld [vmem:[%s3 + $0xc] sm:$0xf]
        %v1646 = vld [vmem:[%s4] sm:$0xff]
        %v1647 = vld [vmem:[%s4 + $0x8] sm:$0xff]
        %v1648 = vld [vmem:[%s4 + $0x10] sm:$0xff]
        %v1649 = vld [vmem:[%s4 + $0x18] sm:$0xff]
        %1651 = vset.pattern.permute.xlu0 0
        %1652 = vperm.xlu0 %1651, %v1646
        %v1653 = vpop.permute.xlu0 %1652
        %1656 = vset.pattern.permute.xlu0 0
        %1657 = vperm.xlu0 %1656, %v1647
        %v1658 = vpop.permute.xlu0 %1657
        %1661 = vset.pattern.permute.xlu0 0
        %1662 = vperm.xlu0 %1661, %v1648
        %v1663 = vpop.permute.xlu0 %1662
        %1666 = vset.pattern.permute.xlu0 0
        %1667 = vperm.xlu0 %1666, %v1649
        %v1668 = vpop.permute.xlu0 %1667
        %v1674 = vunpack.c.l.b16 %v1642
        %v1675 = vunpack.c.l.b16 %v1643
        %v1676 = vunpack.c.l.b16 %v1644
        %v1677 = vunpack.c.l.b16 %v1645
        %v1678 = vpack.c.b16 %v1675, %v1674
        %v1679 = vpack.c.b16 %v1677, %v1676
        %v1681 = vsel %vm354, %v1678, 0
        %v1684 = vsel %vm354, %v1679, 0
        %1686 = vmatprep.subr.bf16.mxu0 0
        %1687 = vmatpush1.bf16.msra.mxu0 %v1640
        %1688 = vmatprep.subr.bf16.mxu0 0
        %1689 = vmatpush1.bf16.msra.mxu0 %v1641
        %1690 = vmatprep.subr.bf16.mxu0 0
        %1691 = vmatpush1.bf16.msra.mxu0 0
        %1692 = vmatprep.subr.bf16.mxu0 0
        %1693 = vmatpush1.bf16.msra.mxu0 0
        %1694 = vmatprep.subr.bf16.mxu0 0
        %1695 = vmatpush1.bf16.msra.mxu0 0
        %1696 = vmatprep.subr.bf16.mxu0 0
        %1697 = vmatpush1.bf16.msra.mxu0 0
        %1698 = vmatprep.subr.bf16.mxu0 0
        %1699 = vmatpush1.bf16.msra.mxu0 0
        %1700 = vmatprep.subr.bf16.mxu0 0
        %1701 = vmatpush1.bf16.msra.mxu0 0
        %1702 = vmatprep.subr.bf16.mxu0 0
        %1703 = vmatpush1.bf16.msra.mxu0 0
        %1704 = vmatprep.subr.bf16.mxu0 0
        %1705 = vmatpush1.bf16.msra.mxu0 0
        %1706 = vmatprep.subr.bf16.mxu0 0
        %1707 = vmatpush1.bf16.msra.mxu0 0
        %1708 = vmatprep.subr.bf16.mxu0 0
        %1709 = vmatpush1.bf16.msra.mxu0 0
        %1710 = vmatprep.subr.bf16.mxu0 0
        %1711 = vmatpush1.bf16.msra.mxu0 0
        %1712 = vmatprep.subr.bf16.mxu0 0
        %1713 = vmatpush1.bf16.msra.mxu0 0
        %1714 = vmatprep.subr.bf16.mxu0 0
        %1715 = vmatpush1.bf16.msra.mxu0 0
        %1716 = vmatprep.subr.bf16.mxu0 0
        %1717 = vmatpush1.bf16.msra.mxu0 0
        %1718 = vmatprep.mubr.bf16.mxu0 0
        %1719 = vmatmul.mubr.bf16.gmra.mrb[0].mxu0 %v1681
        %v1720 = vpop.f32.mrb[0].mxu0
        %v1721 = vadd.f32 %v1653, %v1720
        %v1722 = vpop.f32.mrb[0].mxu0
        %v1723 = vpop.f32.mrb[0].mxu0
        %v1724 = vadd.f32 %v1658, %v1723
        %v1725 = vpop.f32.mrb[0].mxu0
        %1726 = vmatprep.mubr.bf16.mxu0 0
        %1727 = vmatmul.mubr.bf16.gmra.mrb[0].mxu0 %v1684
        %v1728 = vpop.f32.mrb[0].mxu0
        %v1729 = vadd.f32 %v1663, %v1728
        %v1730 = vpop.f32.mrb[0].mxu0
        %v1731 = vpop.f32.mrb[0].mxu0
        %v1732 = vadd.f32 %v1668, %v1731
        %v1733 = vpop.f32.mrb[0].mxu0
        %1734 = vdwg.mxu0
        %1735 = vst [vmem:[%s217] sm:$0xff] %v1721
        %1736 = vst [vmem:[%s217 + $0x8] sm:$0xff] %v1724
        %1737 = vst [vmem:[%s217 + $0x10] sm:$0xff] %v1729
        %1738 = vst [vmem:[%s217 + $0x18] sm:$0xff] %v1732
        %s1739 = sand.u32 %s137, 1
        %s1740 = scalar_lea.sflag [#allocation3], %s1739
        %s1741 = sand.u32 %s137, 1
        %s1742 = smul.addr %s1741, 32
        %s1743 = scalar_lea.vmem [#allocation2], %s1742
        // Predicated region
        $region41: #{tpu_custom_call.1} parent=39 // pred_check
          %p1744 = pneg %p147
        $region42: #{tpu_custom_call.1} parent=39 // pred_check_branch
          %1746 = sbr.rel (%p1744) target = $region44
        $region43: #{tpu_custom_call.1} parent=39 // pred_region
          %s1748 = ssub.s32 512, 512
          %1749 = vsyncadd %s1740, %s1748
          %s1750 = smul.addr %s19, 4
          %s1751 = smul.addr %s1750, 128
          %s1752 = scalar_lea.hbm %s5, %s1751
          %s1753 = sshll.u32 %s1743, 4
          %s1754 = int_to_ptr.vmem [resolvable:$true] %s1753
          %1759 = dma.vmem_to_hbm [thread:$0]  %s1754, 512, %s1752, %s1740, 128, 128, 8
        $region44: #{tpu_custom_call.1} parent=39 // pred_fallthru
          _
      $region40: #{tpu_custom_call.1} parent=5 // pred_fallthru
        _
      %p1760 = scmp.le.s32.totalorder 2, %s14
      // Predicated region
      $region45: #{tpu_custom_call.1} parent=5 // pred_check
        %p1761 = pneg %p1760
      $region46: #{tpu_custom_call.1} parent=5 // pred_check_branch
        %1763 = sbr.rel (%p1761) target = $region48
      $region47: #{tpu_custom_call.1} parent=5 // pred_region
        %s1764 = ssub.s32 %s14, 2
        // Predicated region
        $region49: #{tpu_custom_call.1} parent=47 // pred_check
          %p1765 = pneg %p153
        $region50: #{tpu_custom_call.1} parent=47 // pred_check_branch
          %1767 = sbr.rel (%p1765) target = $region52
        $region51: #{tpu_custom_call.1} parent=47 // pred_region
          %s1768 = sand.u32 %s138, 1
          %s1769 = scalar_lea.sflag [#allocation3], %s1768
          %s1770 = sand.u32 %s138, 1
          %s1771 = smul.addr %s1770, 32
          %s1772 = scalar_lea.vmem [#allocation2], %s1771
          %1773 = dma.done %s1769, 512
        $region52: #{tpu_custom_call.1} parent=47 // pred_fallthru
          _
      $region48: #{tpu_custom_call.1} parent=5 // pred_fallthru
        _
    $region6: #{tpu_custom_call.1} parent=1 // loop_footer
      %s18 = sadd.s32 1, %s14
    $region7: #{tpu_custom_call.1} parent=1 // loop_footer_branch
      %13 = sbr.rel target = $region3
    $region8: #{tpu_custom_call.1} parent=1 // loop_exit
      _
    %1774 = vsyncpa [#allocation3], 1
    %s1775 = scalar_lea.sflag [#allocation3], 1
    %1776 = vsyncpa %s1775, 1

</llo_original>
